<compile_context>
chip_gen: v7x
topology: tpu7x:2x2x1
jax: 0.10.0
libtpu: 0.0.40
codegen_flags: <defaults>
</compile_context>

<pallas_src>
import functools

import numpy as np
import jax
import jax.numpy as jnp
from jax import lax
from jax.experimental import pallas as pl
from jax.experimental.pallas import tpu as pltpu

LANE = 128
SUBLANE = 8


def _round_up(x, m):
    return (x + m - 1) // m * m


def _vmem_limit_bytes():
    """Explicit scoped-VMEM budget: ~7/8 of physical, capped at 100 MiB."""
    try:
        cap = int(pltpu.get_tpu_info().vmem_capacity_bytes)
        return int(min(cap * 7 // 8, 100 * 1024 * 1024))
    except Exception:
        return 48 * 1024 * 1024  # conservative fallback, fits every chip


# ----------------------------------------------------------------------------
# Pallas kernel: one LSTM layer, grid over time CHUNKS.
#   x_ref      : (t_chunk*Bp, Ip)   mxu dtype   flattened (time, batch) rows
#   wih_ref    : (Ip, GC)           mxu dtype   packed input weight (resident)
#   whh_ref    : (Hp, GC)           mxu dtype   packed recurrent weight (resident)
#   b_ref      : (1, GC)            f32         packed b_ih + b_hh (resident)
#   h_seq_ref  : (t_chunk*Bp, Hp)   seq dtype   per-step hidden outputs
#   c_final_ref: (Bp, Hp)           f32         final cell state (last chunk only)
#   gx_ref     : (t_chunk*Bp, GC)   f32 VMEM    fused per-chunk input projection
#   h_state/c_state : (Bp, Hp) f32 VMEM         state carried across chunks
# ----------------------------------------------------------------------------
def _awd_lstm_layer_kernel(x_ref, wih_ref, whh_ref, b_ref,
                           h_seq_ref, c_final_ref,
                           gx_ref, h_state, c_state,
                           *, t_chunk, bp, h_dim, hp, gs, gc, seq_len):
    # Fresh module / hidden is None -> zero initial state.
    @pl.when(pl.program_id(0) == 0)
    def _():
        h_state[...] = jnp.zeros_like(h_state)
        c_state[...] = jnp.zeros_like(c_state)

    cdt = whh_ref.dtype

    # Fused input projection for the whole chunk (rows = t_chunk*bp is a good
    # MXU shape); the gate pre-activations stay in VMEM, never touch HBM.
    gx_ref[...] = (jnp.dot(x_ref[...], wih_ref[...],
                           preferred_element_type=jnp.float32)
                   + b_ref[...])

    whh = whh_ref[...]                                      # resident weight
    # Lane mask keeping the padded hidden columns [h_dim, hp) exactly zero.
    col_ok = lax.broadcasted_iota(jnp.int32, (bp, hp), 1) < h_dim
    chunk_start = pl.program_id(0) * t_chunk

    def gate(z, idx):
        # Gate `idx` starts at packed column idx*gs.  Rotate it down to lane 0
        # (XLU work, overlaps MXU/VPU) and take the first hp lanes.
        shift = (gc - idx * gs) % gc
        if shift:
            z = pltpu.roll(z, shift, axis=1)
        return z[:, :hp]

    def step(t, carry):
        h_prev, c_prev = carry                              # (bp, hp) f32
        r0 = pl.multiple_of(t * bp, bp)
        gates = gx_ref[pl.ds(r0, bp), :] + jnp.dot(
            h_prev.astype(cdt), whh, preferred_element_type=jnp.float32)
        i_g = jnp.where(col_ok, jax.nn.sigmoid(gate(gates, 0)), 0.0)
        f_g = jax.nn.sigmoid(gate(gates, 1))
        g_g = jnp.tanh(gate(gates, 2))
        o_g = jnp.where(col_ok, jax.nn.sigmoid(gate(gates, 3)), 0.0)
        c_new = f_g * c_prev + i_g * g_g
        h_new = o_g * jnp.tanh(c_new)
        valid = chunk_start + t < seq_len                   # masks time padding
        h_nxt = jnp.where(valid, h_new, h_prev)
        c_nxt = jnp.where(valid, c_new, c_prev)
        h_seq_ref[pl.ds(r0, bp), :] = h_nxt.astype(h_seq_ref.dtype)
        return h_nxt, c_nxt

    h_fin, c_fin = lax.fori_loop(0, t_chunk, step,
                                 (h_state[...], c_state[...]), unroll=True)

    # Persist state for the next chunk.
    h_state[...] = h_fin
    c_state[...] = c_fin

    # Only the last chunk needs to expose the final cell state.
    @pl.when(pl.program_id(0) == pl.num_programs(0) - 1)
    def _():
        c_final_ref[...] = c_fin


def lstm_layer_pallas(x, w_ih, w_hh, b_ih, b_hh, *,
                      mxu_dtype=jnp.bfloat16, max_time_chunk=32):
    """One AWD-LSTM layer (torch.nn.LSTM, num_layers=1, zero initial state).

    x: (T, B, I) float.  w_ih: (4H, I), w_hh: (4H, H), b_*: (4H,) in torch gate
    order (i, f, g, o).  Returns (h_seq (T,B,H), h_final (B,H), c_final (B,H)).
    """
    T, B, I = x.shape
    H = w_hh.shape[1]
    Hp = _round_up(H, LANE)
    Bp = _round_up(B, SUBLANE)
    Ip = _round_up(I, LANE)

    # Gate-column packing: per-gate padding to Hp only when it is free,
    # otherwise compact stride-H packing (unpacked in-kernel via XLU rolls).
    aligned_cols = 4 * Hp
    compact_cols = _round_up(4 * H, LANE)
    if compact_cols < aligned_cols:
        gs, gc = H, compact_cols          # compact layout (e.g. H=48 -> 256)
    else:
        gs, gc = Hp, aligned_cols         # aligned layout (H multiple of 128)

    # Time chunking: pad T up to a chunk multiple instead of degrading to
    # single-step chunks for awkward T (padded steps are masked in-kernel).
    n_chunks = -(-T // max_time_chunk)
    t_chunk = -(-T // n_chunks)
    T_pad = n_chunks * t_chunk
    rows = t_chunk * Bp

    f32_path = np.dtype(mxu_dtype) == np.dtype(np.float32)
    seq_dtype = jnp.float32 if f32_path else jnp.bfloat16

    # ---- host-side packing (cheap XLA glue) --------------------------------
    def pack_cols(m_t):                   # (rows, 4H) -> (rows, gc)
        blocks = [m_t[:, k * H:(k + 1) * H] for k in range(4)]
        if gs > H:
            blocks = [jnp.pad(b, ((0, 0), (0, gs - H))) for b in blocks]
        packed = jnp.concatenate(blocks, axis=1)
        if gc > 4 * gs:
            packed = jnp.pad(packed, ((0, 0), (0, gc - 4 * gs)))
        return packed

    wih = jnp.pad(pack_cols(jnp.transpose(w_ih)),
                  ((0, Ip - I), (0, 0))).astype(mxu_dtype)         # (Ip, gc)
    whh = jnp.pad(pack_cols(jnp.transpose(w_hh)),
                  ((0, Hp - H), (0, 0))).astype(mxu_dtype)         # (Hp, gc)
    bias = pack_cols((b_ih + b_hh).reshape(1, 4 * H)).astype(jnp.float32)

    xp = jnp.pad(x, ((0, T_pad - T), (0, Bp - B), (0, Ip - I))).astype(mxu_dtype)
    x2d = xp.reshape(T_pad * Bp, Ip)

    kernel = functools.partial(
        _awd_lstm_layer_kernel, t_chunk=t_chunk, bp=Bp, h_dim=H, hp=Hp,
        gs=gs, gc=gc, seq_len=T)

    grid_spec = pltpu.PrefetchScalarGridSpec(
        num_scalar_prefetch=0,
        grid=(n_chunks,),
        in_specs=[
            # streaming input chunk (default double-buffered)
            pl.BlockSpec((rows, Ip), lambda c: (c, 0)),
            # resident weights / bias: constant index -> single-buffered
            pl.BlockSpec((Ip, gc), lambda c: (0, 0),
                         pipeline_mode=pl.Buffered(1)),
            pl.BlockSpec((Hp, gc), lambda c: (0, 0),
                         pipeline_mode=pl.Buffered(1)),
            pl.BlockSpec((1, gc), lambda c: (0, 0),
                         pipeline_mode=pl.Buffered(1)),
        ],
        out_specs=[
            pl.BlockSpec((rows, Hp), lambda c: (c, 0)),
            pl.BlockSpec((Bp, Hp), lambda c: (0, 0)),     # c_final (tiny)
        ],
        scratch_shapes=[
            pltpu.VMEM((rows, gc), jnp.float32),   # fused per-chunk projection
            pltpu.VMEM((Bp, Hp), jnp.float32),     # h carried across chunks
            pltpu.VMEM((Bp, Hp), jnp.float32),     # c carried across chunks
        ],
    )

    # TODO(synk): v7x — when Bp >= 16, split the batch across both TensorCores
    # (core-parallel batch-block grid axis / core_map); at B=8 the recurrent
    # (Bp, Hp) x (Hp, GC) matmul uses <10% of MXU rows and the kernel is
    # weight-streaming / latency bound.
    h2d, c_final_pad = pl.pallas_call(
        kernel,
        out_shape=(
            jax.ShapeDtypeStruct((T_pad * Bp, Hp), seq_dtype),
            jax.ShapeDtypeStruct((Bp, Hp), jnp.float32),
        ),
        grid_spec=grid_spec,
        compiler_params=pltpu.CompilerParams(
            dimension_semantics=("arbitrary",),        # serial recurrence
            vmem_limit_bytes=_vmem_limit_bytes(),
        ),
    )(x2d, wih, whh, bias)

    h_seq = h2d.reshape(T_pad, Bp, Hp)[:T, :B, :H]
    h_final = h_seq[-1]
    c_final = c_final_pad[:B, :H]
    return h_seq, h_final, c_final


# ----------------------------------------------------------------------------
# Pure-JAX reference (for validation).
# ----------------------------------------------------------------------------
def lstm_layer_ref(x, w_ih, w_hh, b_ih, b_hh):
    T, B, I = x.shape
    H = w_hh.shape[1]
    hi = jax.lax.Precision.HIGHEST

    def step(carry, x_t):
        h, c = carry
        gates = (jnp.dot(x_t, w_ih.T, precision=hi) + b_ih
                 + jnp.dot(h, w_hh.T, precision=hi) + b_hh)
        i, f, g, o = jnp.split(gates, 4, axis=-1)
        i = jax.nn.sigmoid(i)
        f = jax.nn.sigmoid(f)
        g = jnp.tanh(g)
        o = jax.nn.sigmoid(o)
        c = f * c + i * g
        h = o * jnp.tanh(c)
        return (h, c), h

    init = (jnp.zeros((B, H), jnp.float32), jnp.zeros((B, H), jnp.float32))
    (h_T, c_T), hs = lax.scan(step, init, x)
    return hs, h_T, c_T


# ----------------------------------------------------------------------------
# AwdLSTM parameters + forward (eval mode: all dropouts are identity).
# ----------------------------------------------------------------------------
def init_awd_lstm_params(key, num_vocabulary, size_embedding, size_hidden,
                         num_layers, initialization_range=0.1):
    assert num_layers >= 2
    keys = jax.random.split(key, 1 + 4 * num_layers)
    params = {
        "embedding": jax.random.uniform(
            keys[0], (num_vocabulary, size_embedding), jnp.float32,
            -initialization_range, initialization_range),
        "layers": [],
    }
    for idx in range(num_layers):
        if idx == 0:
            in_sz, out_sz = size_embedding, size_hidden
        elif idx == num_layers - 1:
            in_sz, out_sz = size_hidden, size_embedding
        else:
            in_sz, out_sz = size_hidden, size_hidden
        stdv = 1.0 / np.sqrt(out_sz)
        k = keys[1 + 4 * idx: 1 + 4 * (idx + 1)]
        params["layers"].append({
            "w_ih": jax.random.uniform(k[0], (4 * out_sz, in_sz), jnp.float32, -stdv, stdv),
            "w_hh": jax.random.uniform(k[1], (4 * out_sz, out_sz), jnp.float32, -stdv, stdv),
            "b_ih": jax.random.uniform(k[2], (4 * out_sz,), jnp.float32, -stdv, stdv),
            "b_hh": jax.random.uniform(k[3], (4 * out_sz,), jnp.float32, -stdv, stdv),
        })
    return params


def awd_lstm_forward(tokens, params, layer_fn=lstm_layer_pallas):
    """tokens: (T, B) int32.  Returns dict mirroring AwdLSTMOutput (eval mode)."""
    T, B = tokens.shape
    # Embedding lookup (gather) as plain-JAX glue; padding_idx only affects
    # gradients in PyTorch, not forward values.
    emb = jnp.take(params["embedding"], tokens, axis=0)     # (T, B, E)

    x = emb
    layer_outputs = []
    for lp in params["layers"]:
        # TODO(synk): persistent self.hidden across forward calls (truncated
        # BPTT statefulness) is not modeled; every call starts from zeros,
        # i.e. a fresh module / right after reset().
        h_seq, h_final, c_final = layer_fn(
            x, lp["w_ih"], lp["w_hh"], lp["b_ih"], lp["b_hh"])
        H = h_seq.shape[-1]
        layer_outputs.append({
            "dropped_out_input": x,                     # dropout identity in eval
            "h_init": jnp.zeros((1, B, H), jnp.float32),
            "c_init": jnp.zeros((1, B, H), jnp.float32),
            "h_final": h_final[None],                   # (1, B, H) like torch
            "c_final": c_final[None],
            "h": h_seq,
        })
        x = h_seq

    return {
        "dropped_out_embedding": emb,
        "layer_outputs": layer_outputs,
        "dropped_out_final": x,                         # locked_dropout identity in eval
    }


if __name__ == "__main__":
    # Small, module-consistent shapes.
    NUM_VOCAB = 50
    SIZE_EMBEDDING = 32
    SIZE_HIDDEN = 48
    NUM_LAYERS = 3
    SEQ_LEN = 8
    BATCH = 8

    key = jax.random.PRNGKey(0)
    k_param, k_tok, k_param2 = jax.random.split(key, 3)
    params = init_awd_lstm_params(k_param, NUM_VOCAB, SIZE_EMBEDDING,
                                  SIZE_HIDDEN, NUM_LAYERS)
    tokens = jax.random.randint(k_tok, (SEQ_LEN, BATCH), 0, NUM_VOCAB,
                                dtype=jnp.int32)

    # Pure-JAX reference.
    ref = awd_lstm_forward(tokens, params, layer_fn=lstm_layer_ref)

    # f32 MXU path: tight validation (exercises the compact gate layout, H=48).
    pallas_f32 = functools.partial(lstm_layer_pallas, mxu_dtype=jnp.float32)
    out_f32 = awd_lstm_forward(tokens, params, layer_fn=pallas_f32)
    jax.block_until_ready(out_f32["dropped_out_final"])
    np.testing.assert_allclose(np.asarray(out_f32["dropped_out_final"]),
                               np.asarray(ref["dropped_out_final"]),
                               rtol=2e-4, atol=2e-4)
    for lo, lr in zip(out_f32["layer_outputs"], ref["layer_outputs"]):
        np.testing.assert_allclose(np.asarray(lo["h"]), np.asarray(lr["h"]),
                                   rtol=2e-4, atol=2e-4)
        np.testing.assert_allclose(np.asarray(lo["h_final"]),
                                   np.asarray(lr["h_final"]),
                                   rtol=2e-4, atol=2e-4)
        np.testing.assert_allclose(np.asarray(lo["c_final"]),
                                   np.asarray(lr["c_final"]),
                                   rtol=2e-4, atol=2e-4)

    # bf16 fast path (default on all chips): loose validation.
    out_bf16 = awd_lstm_forward(tokens, params, layer_fn=lstm_layer_pallas)
    jax.block_until_ready(out_bf16["dropped_out_final"])
    np.testing.assert_allclose(
        np.asarray(jnp.asarray(out_bf16["dropped_out_final"], jnp.float32)),
        np.asarray(ref["dropped_out_final"]), rtol=3e-2, atol=3e-2)

    # Second config with H a multiple of 128 to exercise the aligned layout.
    params_a = init_awd_lstm_params(k_param2, NUM_VOCAB, 128, 128, 2)
    ref_a = awd_lstm_forward(tokens, params_a, layer_fn=lstm_layer_ref)
    out_a = awd_lstm_forward(tokens, params_a, layer_fn=pallas_f32)
    jax.block_until_ready(out_a["dropped_out_final"])
    np.testing.assert_allclose(np.asarray(out_a["dropped_out_final"]),
                               np.asarray(ref_a["dropped_out_final"]),
                               rtol=2e-4, atol=2e-4)

    print("KERNEL_OK")
</pallas_src>

<mosaic_0001>
module attributes {stable_mosaic.version = 11 : i64} {
  func.func @_awd_lstm_layer_kernel(%arg0: i32, %arg1: memref<64x128xf32, #tpu.memory_space<vmem>>, %arg2: memref<128x256xf32, #tpu.memory_space<vmem>>, %arg3: memref<128x256xf32, #tpu.memory_space<vmem>>, %arg4: memref<1x256xf32, #tpu.memory_space<vmem>>, %arg5: memref<64x128xf32, #tpu.memory_space<vmem>>, %arg6: memref<8x128xf32, #tpu.memory_space<vmem>>, %arg7: memref<64x256xf32, #tpu.memory_space<vmem>>, %arg8: memref<8x128xf32, #tpu.memory_space<vmem>>, %arg9: memref<8x128xf32, #tpu.memory_space<vmem>>) attributes {dimension_semantics = [#tpu.dimension_semantics<arbitrary>], iteration_bounds = array<i64: 1>, scalar_prefetch = 0 : i64, scratch_operands = 3 : i64, tpu.core_type = #tpu.core_type<tc>, window_params = [{transform_indices = @transform_0, window_bounds = array<i64: 64, 128>}, {pipeline_mode = #tpu.pipeline_mode<synchronous>, transform_indices = @transform_1, window_bounds = array<i64: 128, 256>}, {pipeline_mode = #tpu.pipeline_mode<synchronous>, transform_indices = @transform_2, window_bounds = array<i64: 128, 256>}, {pipeline_mode = #tpu.pipeline_mode<synchronous>, transform_indices = @transform_3, window_bounds = array<i64: 1, 256>}, {transform_indices = @transform_4, window_bounds = array<i64: 64, 128>}, {pipeline_mode = #tpu.pipeline_mode<synchronous>, transform_indices = @transform_5, window_bounds = array<i64: 8, 128>}]} {
    %c0_i32 = arith.constant 0 : i32
    %0 = arith.cmpi eq, %arg0, %c0_i32 : i32
    %1 = arith.extui %0 : i1 to i32
    %c0_i32_0 = arith.constant 0 : i32
    %2 = arith.cmpi ne, %1, %c0_i32_0 : i32
    scf.if %2 {
      %cst_123 = arith.constant 0.000000e+00 : f32
      %374 = vector.broadcast %cst_123 : f32 to vector<8x128xf32>
      %c0_124 = arith.constant 0 : index
      %c0_125 = arith.constant 0 : index
      %375 = vector.load %arg8[%c0_124, %c0_125] : memref<8x128xf32, #tpu.memory_space<vmem>>, vector<8x128xf32>
      tpu.vector_store %arg8[%c0_124, %c0_125], %374 {strides = array<i32>} : memref<8x128xf32, #tpu.memory_space<vmem>>, vector<8x128xf32>,
      %cst_126 = arith.constant 0.000000e+00 : f32
      %376 = vector.broadcast %cst_126 : f32 to vector<8x128xf32>
      %c0_127 = arith.constant 0 : index
      %c0_128 = arith.constant 0 : index
      %377 = vector.load %arg9[%c0_127, %c0_128] : memref<8x128xf32, #tpu.memory_space<vmem>>, vector<8x128xf32>
      tpu.vector_store %arg9[%c0_127, %c0_128], %376 {strides = array<i32>} : memref<8x128xf32, #tpu.memory_space<vmem>>, vector<8x128xf32>,
    } else {
    }
    %c0 = arith.constant 0 : index
    %c0_1 = arith.constant 0 : index
    %3 = vector.load %arg1[%c0, %c0_1] : memref<64x128xf32, #tpu.memory_space<vmem>>, vector<64x128xf32>
    %c0_2 = arith.constant 0 : index
    %c0_3 = arith.constant 0 : index
    %4 = vector.load %arg2[%c0_2, %c0_3] : memref<128x256xf32, #tpu.memory_space<vmem>>, vector<128x256xf32>
    %cst = arith.constant dense<0.000000e+00> : vector<64x256xf32>
    %5 = tpu.matmul %3, %4, %cst {dimension_numbers = #tpu.dot_dimension_numbers<[1], [0], [0], [1], [0, 0, 1, 1], [], []>} : vector<64x128xf32>, vector<128x256xf32>, vector<64x256xf32> -> vector<64x256xf32>
    %c0_4 = arith.constant 0 : index
    %c0_5 = arith.constant 0 : index
    %6 = vector.load %arg4[%c0_4, %c0_5] : memref<1x256xf32, #tpu.memory_space<vmem>>, vector<1x256xf32>
    %7 = vector.broadcast %6 : vector<1x256xf32> to vector<64x256xf32>
    %8 = arith.addf %5, %7 : vector<64x256xf32>
    %c0_6 = arith.constant 0 : index
    %c0_7 = arith.constant 0 : index
    %9 = vector.load %arg7[%c0_6, %c0_7] : memref<64x256xf32, #tpu.memory_space<vmem>>, vector<64x256xf32>
    tpu.vector_store %arg7[%c0_6, %c0_7], %8 {strides = array<i32>} : memref<64x256xf32, #tpu.memory_space<vmem>>, vector<64x256xf32>,
    %c0_8 = arith.constant 0 : index
    %c0_9 = arith.constant 0 : index
    %10 = vector.load %arg3[%c0_8, %c0_9] : memref<128x256xf32, #tpu.memory_space<vmem>>, vector<128x256xf32>
    %11 = tpu.iota {dimensions = array<i32: 1>} : vector<8x128xi32>
    %c48_i32 = arith.constant 48 : i32
    %12 = vector.broadcast %c48_i32 : i32 to vector<8x128xi32>
    %13 = arith.cmpi slt, %11, %12 : vector<8x128xi32>
    %c8_i32 = arith.constant 8 : i32
    %14 = arith.muli %arg0, %c8_i32 : i32
    %c0_10 = arith.constant 0 : index
    %c0_11 = arith.constant 0 : index
    %15 = vector.load %arg8[%c0_10, %c0_11] : memref<8x128xf32, #tpu.memory_space<vmem>>, vector<8x128xf32>
    %c0_12 = arith.constant 0 : index
    %c0_13 = arith.constant 0 : index
    %16 = vector.load %arg9[%c0_12, %c0_13] : memref<8x128xf32, #tpu.memory_space<vmem>>, vector<8x128xf32>
    %c0_i32_14 = arith.constant 0 : i32
    %c8_i32_15 = arith.constant 8 : i32
    %17 = arith.muli %c0_i32_14, %c8_i32_15 : i32
    %18 = tpu.assume_multiple %17, 8 : i32
    %19 = arith.index_cast %18 : i32 to index
    %c0_16 = arith.constant 0 : index
    %20 = vector.load %arg7[%19, %c0_16] : memref<64x256xf32, #tpu.memory_space<vmem>>, vector<8x256xf32>
    %cst_17 = arith.constant dense<0.000000e+00> : vector<8x256xf32>
    %21 = tpu.matmul %15, %10, %cst_17 {dimension_numbers = #tpu.dot_dimension_numbers<[1], [0], [0], [1], [0, 0, 1, 1], [], []>} : vector<8x128xf32>, vector<128x256xf32>, vector<8x256xf32> -> vector<8x256xf32>
    %22 = arith.addf %20, %21 : vector<8x256xf32>
    %23 = vector.extract_strided_slice %22 {offsets = [0, 0], sizes = [8, 128], strides = [1, 1]} : vector<8x256xf32> to vector<8x128xf32>
    %24 = arith.negf %23 : vector<8x128xf32>
    %25 = math.exp %24 : vector<8x128xf32>
    %cst_18 = arith.constant 1.000000e+00 : f32
    %26 = vector.broadcast %cst_18 : f32 to vector<8x128xf32>
    %27 = arith.addf %26, %25 : vector<8x128xf32>
    %28 = arith.divf %26, %27 : vector<8x128xf32>
    %cst_19 = arith.constant 0.000000e+00 : f32
    %29 = vector.broadcast %cst_19 : f32 to vector<8x128xf32>
    %30 = arith.select %13, %28, %29 : vector<8x128xi1>, vector<8x128xf32>
    %c208_i32 = arith.constant 208 : i32
    %31 = tpu.dynamic_rotate %22 by %c208_i32 dim 1 : vector<8x256xf32>, i32 -> vector<8x256xf32>
    %32 = vector.extract_strided_slice %31 {offsets = [0, 0], sizes = [8, 128], strides = [1, 1]} : vector<8x256xf32> to vector<8x128xf32>
    %33 = arith.negf %32 : vector<8x128xf32>
    %34 = math.exp %33 : vector<8x128xf32>
    %cst_20 = arith.constant 1.000000e+00 : f32
    %35 = vector.broadcast %cst_20 : f32 to vector<8x128xf32>
    %36 = arith.addf %35, %34 : vector<8x128xf32>
    %37 = arith.divf %35, %36 : vector<8x128xf32>
    %c160_i32 = arith.constant 160 : i32
    %38 = tpu.dynamic_rotate %22 by %c160_i32 dim 1 : vector<8x256xf32>, i32 -> vector<8x256xf32>
    %39 = vector.extract_strided_slice %38 {offsets = [0, 0], sizes = [8, 128], strides = [1, 1]} : vector<8x256xf32> to vector<8x128xf32>
    %40 = math.tanh %39 : vector<8x128xf32>
    %c112_i32 = arith.constant 112 : i32
    %41 = tpu.dynamic_rotate %22 by %c112_i32 dim 1 : vector<8x256xf32>, i32 -> vector<8x256xf32>
    %42 = vector.extract_strided_slice %41 {offsets = [0, 0], sizes = [8, 128], strides = [1, 1]} : vector<8x256xf32> to vector<8x128xf32>
    %43 = arith.negf %42 : vector<8x128xf32>
    %44 = math.exp %43 : vector<8x128xf32>
    %cst_21 = arith.constant 1.000000e+00 : f32
    %45 = vector.broadcast %cst_21 : f32 to vector<8x128xf32>
    %46 = arith.addf %45, %44 : vector<8x128xf32>
    %47 = arith.divf %45, %46 : vector<8x128xf32>
    %cst_22 = arith.constant 0.000000e+00 : f32
    %48 = vector.broadcast %cst_22 : f32 to vector<8x128xf32>
    %49 = arith.select %13, %47, %48 : vector<8x128xi1>, vector<8x128xf32>
    %50 = arith.mulf %37, %16 : vector<8x128xf32>
    %51 = arith.mulf %30, %40 : vector<8x128xf32>
    %52 = arith.addf %50, %51 : vector<8x128xf32>
    %53 = math.tanh %52 : vector<8x128xf32>
    %54 = arith.mulf %49, %53 : vector<8x128xf32>
    %55 = arith.addi %14, %c0_i32_14 : i32
    %c8_i32_23 = arith.constant 8 : i32
    %56 = arith.cmpi slt, %55, %c8_i32_23 : i32
    %57 = arith.select %56, %54, %15 : vector<8x128xf32>
    %58 = arith.select %56, %52, %16 : vector<8x128xf32>
    %59 = arith.index_cast %18 : i32 to index
    %c0_24 = arith.constant 0 : index
    %60 = vector.load %arg5[%59, %c0_24] : memref<64x128xf32, #tpu.memory_space<vmem>>, vector<8x128xf32>
    tpu.vector_store %arg5[%59, %c0_24], %57 {strides = array<i32>} : memref<64x128xf32, #tpu.memory_space<vmem>>, vector<8x128xf32>,
    %c1_i32 = arith.constant 1 : i32
    %c8_i32_25 = arith.constant 8 : i32
    %61 = arith.muli %c1_i32, %c8_i32_25 : i32
    %62 = tpu.assume_multiple %61, 8 : i32
    %63 = arith.index_cast %62 : i32 to index
    %c0_26 = arith.constant 0 : index
    %64 = vector.load %arg7[%63, %c0_26] : memref<64x256xf32, #tpu.memory_space<vmem>>, vector<8x256xf32>
    %cst_27 = arith.constant dense<0.000000e+00> : vector<8x256xf32>
    %65 = tpu.matmul %57, %10, %cst_27 {dimension_numbers = #tpu.dot_dimension_numbers<[1], [0], [0], [1], [0, 0, 1, 1], [], []>} : vector<8x128xf32>, vector<128x256xf32>, vector<8x256xf32> -> vector<8x256xf32>
    %66 = arith.addf %64, %65 : vector<8x256xf32>
    %67 = vector.extract_strided_slice %66 {offsets = [0, 0], sizes = [8, 128], strides = [1, 1]} : vector<8x256xf32> to vector<8x128xf32>
    %68 = arith.negf %67 : vector<8x128xf32>
    %69 = math.exp %68 : vector<8x128xf32>
    %cst_28 = arith.constant 1.000000e+00 : f32
    %70 = vector.broadcast %cst_28 : f32 to vector<8x128xf32>
    %71 = arith.addf %70, %69 : vector<8x128xf32>
    %72 = arith.divf %70, %71 : vector<8x128xf32>
    %cst_29 = arith.constant 0.000000e+00 : f32
    %73 = vector.broadcast %cst_29 : f32 to vector<8x128xf32>
    %74 = arith.select %13, %72, %73 : vector<8x128xi1>, vector<8x128xf32>
    %c208_i32_30 = arith.constant 208 : i32
    %75 = tpu.dynamic_rotate %66 by %c208_i32_30 dim 1 : vector<8x256xf32>, i32 -> vector<8x256xf32>
    %76 = vector.extract_strided_slice %75 {offsets = [0, 0], sizes = [8, 128], strides = [1, 1]} : vector<8x256xf32> to vector<8x128xf32>
    %77 = arith.negf %76 : vector<8x128xf32>
    %78 = math.exp %77 : vector<8x128xf32>
    %cst_31 = arith.constant 1.000000e+00 : f32
    %79 = vector.broadcast %cst_31 : f32 to vector<8x128xf32>
    %80 = arith.addf %79, %78 : vector<8x128xf32>
    %81 = arith.divf %79, %80 : vector<8x128xf32>
    %c160_i32_32 = arith.constant 160 : i32
    %82 = tpu.dynamic_rotate %66 by %c160_i32_32 dim 1 : vector<8x256xf32>, i32 -> vector<8x256xf32>
    %83 = vector.extract_strided_slice %82 {offsets = [0, 0], sizes = [8, 128], strides = [1, 1]} : vector<8x256xf32> to vector<8x128xf32>
    %84 = math.tanh %83 : vector<8x128xf32>
    %c112_i32_33 = arith.constant 112 : i32
    %85 = tpu.dynamic_rotate %66 by %c112_i32_33 dim 1 : vector<8x256xf32>, i32 -> vector<8x256xf32>
    %86 = vector.extract_strided_slice %85 {offsets = [0, 0], sizes = [8, 128], strides = [1, 1]} : vector<8x256xf32> to vector<8x128xf32>
    %87 = arith.negf %86 : vector<8x128xf32>
    %88 = math.exp %87 : vector<8x128xf32>
    %cst_34 = arith.constant 1.000000e+00 : f32
    %89 = vector.broadcast %cst_34 : f32 to vector<8x128xf32>
    %90 = arith.addf %89, %88 : vector<8x128xf32>
    %91 = arith.divf %89, %90 : vector<8x128xf32>
    %cst_35 = arith.constant 0.000000e+00 : f32
    %92 = vector.broadcast %cst_35 : f32 to vector<8x128xf32>
    %93 = arith.select %13, %91, %92 : vector<8x128xi1>, vector<8x128xf32>
    %94 = arith.mulf %81, %58 : vector<8x128xf32>
    %95 = arith.mulf %74, %84 : vector<8x128xf32>
    %96 = arith.addf %94, %95 : vector<8x128xf32>
    %97 = math.tanh %96 : vector<8x128xf32>
    %98 = arith.mulf %93, %97 : vector<8x128xf32>
    %99 = arith.addi %14, %c1_i32 : i32
    %c8_i32_36 = arith.constant 8 : i32
    %100 = arith.cmpi slt, %99, %c8_i32_36 : i32
    %101 = arith.select %100, %98, %57 : vector<8x128xf32>
    %102 = arith.select %100, %96, %58 : vector<8x128xf32>
    %103 = arith.index_cast %62 : i32 to index
    %c0_37 = arith.constant 0 : index
    %104 = vector.load %arg5[%103, %c0_37] : memref<64x128xf32, #tpu.memory_space<vmem>>, vector<8x128xf32>
    tpu.vector_store %arg5[%103, %c0_37], %101 {strides = array<i32>} : memref<64x128xf32, #tpu.memory_space<vmem>>, vector<8x128xf32>,
    %c2_i32 = arith.constant 2 : i32
    %c8_i32_38 = arith.constant 8 : i32
    %105 = arith.muli %c2_i32, %c8_i32_38 : i32
    %106 = tpu.assume_multiple %105, 8 : i32
    %107 = arith.index_cast %106 : i32 to index
    %c0_39 = arith.constant 0 : index
    %108 = vector.load %arg7[%107, %c0_39] : memref<64x256xf32, #tpu.memory_space<vmem>>, vector<8x256xf32>
    %cst_40 = arith.constant dense<0.000000e+00> : vector<8x256xf32>
    %109 = tpu.matmul %101, %10, %cst_40 {dimension_numbers = #tpu.dot_dimension_numbers<[1], [0], [0], [1], [0, 0, 1, 1], [], []>} : vector<8x128xf32>, vector<128x256xf32>, vector<8x256xf32> -> vector<8x256xf32>
    %110 = arith.addf %108, %109 : vector<8x256xf32>
    %111 = vector.extract_strided_slice %110 {offsets = [0, 0], sizes = [8, 128], strides = [1, 1]} : vector<8x256xf32> to vector<8x128xf32>
    %112 = arith.negf %111 : vector<8x128xf32>
    %113 = math.exp %112 : vector<8x128xf32>
    %cst_41 = arith.constant 1.000000e+00 : f32
    %114 = vector.broadcast %cst_41 : f32 to vector<8x128xf32>
    %115 = arith.addf %114, %113 : vector<8x128xf32>
    %116 = arith.divf %114, %115 : vector<8x128xf32>
    %cst_42 = arith.constant 0.000000e+00 : f32
    %117 = vector.broadcast %cst_42 : f32 to vector<8x128xf32>
    %118 = arith.select %13, %116, %117 : vector<8x128xi1>, vector<8x128xf32>
    %c208_i32_43 = arith.constant 208 : i32
    %119 = tpu.dynamic_rotate %110 by %c208_i32_43 dim 1 : vector<8x256xf32>, i32 -> vector<8x256xf32>
    %120 = vector.extract_strided_slice %119 {offsets = [0, 0], sizes = [8, 128], strides = [1, 1]} : vector<8x256xf32> to vector<8x128xf32>
    %121 = arith.negf %120 : vector<8x128xf32>
    %122 = math.exp %121 : vector<8x128xf32>
    %cst_44 = arith.constant 1.000000e+00 : f32
    %123 = vector.broadcast %cst_44 : f32 to vector<8x128xf32>
    %124 = arith.addf %123, %122 : vector<8x128xf32>
    %125 = arith.divf %123, %124 : vector<8x128xf32>
    %c160_i32_45 = arith.constant 160 : i32
    %126 = tpu.dynamic_rotate %110 by %c160_i32_45 dim 1 : vector<8x256xf32>, i32 -> vector<8x256xf32>
    %127 = vector.extract_strided_slice %126 {offsets = [0, 0], sizes = [8, 128], strides = [1, 1]} : vector<8x256xf32> to vector<8x128xf32>
    %128 = math.tanh %127 : vector<8x128xf32>
    %c112_i32_46 = arith.constant 112 : i32
    %129 = tpu.dynamic_rotate %110 by %c112_i32_46 dim 1 : vector<8x256xf32>, i32 -> vector<8x256xf32>
    %130 = vector.extract_strided_slice %129 {offsets = [0, 0], sizes = [8, 128], strides = [1, 1]} : vector<8x256xf32> to vector<8x128xf32>
    %131 = arith.negf %130 : vector<8x128xf32>
    %132 = math.exp %131 : vector<8x128xf32>
    %cst_47 = arith.constant 1.000000e+00 : f32
    %133 = vector.broadcast %cst_47 : f32 to vector<8x128xf32>
    %134 = arith.addf %133, %132 : vector<8x128xf32>
    %135 = arith.divf %133, %134 : vector<8x128xf32>
    %cst_48 = arith.constant 0.000000e+00 : f32
    %136 = vector.broadcast %cst_48 : f32 to vector<8x128xf32>
    %137 = arith.select %13, %135, %136 : vector<8x128xi1>, vector<8x128xf32>
    %138 = arith.mulf %125, %102 : vector<8x128xf32>
    %139 = arith.mulf %118, %128 : vector<8x128xf32>
    %140 = arith.addf %138, %139 : vector<8x128xf32>
    %141 = math.tanh %140 : vector<8x128xf32>
    %142 = arith.mulf %137, %141 : vector<8x128xf32>
    %143 = arith.addi %14, %c2_i32 : i32
    %c8_i32_49 = arith.constant 8 : i32
    %144 = arith.cmpi slt, %143, %c8_i32_49 : i32
    %145 = arith.select %144, %142, %101 : vector<8x128xf32>
    %146 = arith.select %144, %140, %102 : vector<8x128xf32>
    %147 = arith.index_cast %106 : i32 to index
    %c0_50 = arith.constant 0 : index
    %148 = vector.load %arg5[%147, %c0_50] : memref<64x128xf32, #tpu.memory_space<vmem>>, vector<8x128xf32>
    tpu.vector_store %arg5[%147, %c0_50], %145 {strides = array<i32>} : memref<64x128xf32, #tpu.memory_space<vmem>>, vector<8x128xf32>,
    %c3_i32 = arith.constant 3 : i32
    %c8_i32_51 = arith.constant 8 : i32
    %149 = arith.muli %c3_i32, %c8_i32_51 : i32
    %150 = tpu.assume_multiple %149, 8 : i32
    %151 = arith.index_cast %150 : i32 to index
    %c0_52 = arith.constant 0 : index
    %152 = vector.load %arg7[%151, %c0_52] : memref<64x256xf32, #tpu.memory_space<vmem>>, vector<8x256xf32>
    %cst_53 = arith.constant dense<0.000000e+00> : vector<8x256xf32>
    %153 = tpu.matmul %145, %10, %cst_53 {dimension_numbers = #tpu.dot_dimension_numbers<[1], [0], [0], [1], [0, 0, 1, 1], [], []>} : vector<8x128xf32>, vector<128x256xf32>, vector<8x256xf32> -> vector<8x256xf32>
    %154 = arith.addf %152, %153 : vector<8x256xf32>
    %155 = vector.extract_strided_slice %154 {offsets = [0, 0], sizes = [8, 128], strides = [1, 1]} : vector<8x256xf32> to vector<8x128xf32>
    %156 = arith.negf %155 : vector<8x128xf32>
    %157 = math.exp %156 : vector<8x128xf32>
    %cst_54 = arith.constant 1.000000e+00 : f32
    %158 = vector.broadcast %cst_54 : f32 to vector<8x128xf32>
    %159 = arith.addf %158, %157 : vector<8x128xf32>
    %160 = arith.divf %158, %159 : vector<8x128xf32>
    %cst_55 = arith.constant 0.000000e+00 : f32
    %161 = vector.broadcast %cst_55 : f32 to vector<8x128xf32>
    %162 = arith.select %13, %160, %161 : vector<8x128xi1>, vector<8x128xf32>
    %c208_i32_56 = arith.constant 208 : i32
    %163 = tpu.dynamic_rotate %154 by %c208_i32_56 dim 1 : vector<8x256xf32>, i32 -> vector<8x256xf32>
    %164 = vector.extract_strided_slice %163 {offsets = [0, 0], sizes = [8, 128], strides = [1, 1]} : vector<8x256xf32> to vector<8x128xf32>
    %165 = arith.negf %164 : vector<8x128xf32>
    %166 = math.exp %165 : vector<8x128xf32>
    %cst_57 = arith.constant 1.000000e+00 : f32
    %167 = vector.broadcast %cst_57 : f32 to vector<8x128xf32>
    %168 = arith.addf %167, %166 : vector<8x128xf32>
    %169 = arith.divf %167, %168 : vector<8x128xf32>
    %c160_i32_58 = arith.constant 160 : i32
    %170 = tpu.dynamic_rotate %154 by %c160_i32_58 dim 1 : vector<8x256xf32>, i32 -> vector<8x256xf32>
    %171 = vector.extract_strided_slice %170 {offsets = [0, 0], sizes = [8, 128], strides = [1, 1]} : vector<8x256xf32> to vector<8x128xf32>
    %172 = math.tanh %171 : vector<8x128xf32>
    %c112_i32_59 = arith.constant 112 : i32
    %173 = tpu.dynamic_rotate %154 by %c112_i32_59 dim 1 : vector<8x256xf32>, i32 -> vector<8x256xf32>
    %174 = vector.extract_strided_slice %173 {offsets = [0, 0], sizes = [8, 128], strides = [1, 1]} : vector<8x256xf32> to vector<8x128xf32>
    %175 = arith.negf %174 : vector<8x128xf32>
    %176 = math.exp %175 : vector<8x128xf32>
    %cst_60 = arith.constant 1.000000e+00 : f32
    %177 = vector.broadcast %cst_60 : f32 to vector<8x128xf32>
    %178 = arith.addf %177, %176 : vector<8x128xf32>
    %179 = arith.divf %177, %178 : vector<8x128xf32>
    %cst_61 = arith.constant 0.000000e+00 : f32
    %180 = vector.broadcast %cst_61 : f32 to vector<8x128xf32>
    %181 = arith.select %13, %179, %180 : vector<8x128xi1>, vector<8x128xf32>
    %182 = arith.mulf %169, %146 : vector<8x128xf32>
    %183 = arith.mulf %162, %172 : vector<8x128xf32>
    %184 = arith.addf %182, %183 : vector<8x128xf32>
    %185 = math.tanh %184 : vector<8x128xf32>
    %186 = arith.mulf %181, %185 : vector<8x128xf32>
    %187 = arith.addi %14, %c3_i32 : i32
    %c8_i32_62 = arith.constant 8 : i32
    %188 = arith.cmpi slt, %187, %c8_i32_62 : i32
    %189 = arith.select %188, %186, %145 : vector<8x128xf32>
    %190 = arith.select %188, %184, %146 : vector<8x128xf32>
    %191 = arith.index_cast %150 : i32 to index
    %c0_63 = arith.constant 0 : index
    %192 = vector.load %arg5[%191, %c0_63] : memref<64x128xf32, #tpu.memory_space<vmem>>, vector<8x128xf32>
    tpu.vector_store %arg5[%191, %c0_63], %189 {strides = array<i32>} : memref<64x128xf32, #tpu.memory_space<vmem>>, vector<8x128xf32>,
    %c4_i32 = arith.constant 4 : i32
    %c8_i32_64 = arith.constant 8 : i32
    %193 = arith.muli %c4_i32, %c8_i32_64 : i32
    %194 = tpu.assume_multiple %193, 8 : i32
    %195 = arith.index_cast %194 : i32 to index
    %c0_65 = arith.constant 0 : index
    %196 = vector.load %arg7[%195, %c0_65] : memref<64x256xf32, #tpu.memory_space<vmem>>, vector<8x256xf32>
    %cst_66 = arith.constant dense<0.000000e+00> : vector<8x256xf32>
    %197 = tpu.matmul %189, %10, %cst_66 {dimension_numbers = #tpu.dot_dimension_numbers<[1], [0], [0], [1], [0, 0, 1, 1], [], []>} : vector<8x128xf32>, vector<128x256xf32>, vector<8x256xf32> -> vector<8x256xf32>
    %198 = arith.addf %196, %197 : vector<8x256xf32>
    %199 = vector.extract_strided_slice %198 {offsets = [0, 0], sizes = [8, 128], strides = [1, 1]} : vector<8x256xf32> to vector<8x128xf32>
    %200 = arith.negf %199 : vector<8x128xf32>
    %201 = math.exp %200 : vector<8x128xf32>
    %cst_67 = arith.constant 1.000000e+00 : f32
    %202 = vector.broadcast %cst_67 : f32 to vector<8x128xf32>
    %203 = arith.addf %202, %201 : vector<8x128xf32>
    %204 = arith.divf %202, %203 : vector<8x128xf32>
    %cst_68 = arith.constant 0.000000e+00 : f32
    %205 = vector.broadcast %cst_68 : f32 to vector<8x128xf32>
    %206 = arith.select %13, %204, %205 : vector<8x128xi1>, vector<8x128xf32>
    %c208_i32_69 = arith.constant 208 : i32
    %207 = tpu.dynamic_rotate %198 by %c208_i32_69 dim 1 : vector<8x256xf32>, i32 -> vector<8x256xf32>
    %208 = vector.extract_strided_slice %207 {offsets = [0, 0], sizes = [8, 128], strides = [1, 1]} : vector<8x256xf32> to vector<8x128xf32>
    %209 = arith.negf %208 : vector<8x128xf32>
    %210 = math.exp %209 : vector<8x128xf32>
    %cst_70 = arith.constant 1.000000e+00 : f32
    %211 = vector.broadcast %cst_70 : f32 to vector<8x128xf32>
    %212 = arith.addf %211, %210 : vector<8x128xf32>
    %213 = arith.divf %211, %212 : vector<8x128xf32>
    %c160_i32_71 = arith.constant 160 : i32
    %214 = tpu.dynamic_rotate %198 by %c160_i32_71 dim 1 : vector<8x256xf32>, i32 -> vector<8x256xf32>
    %215 = vector.extract_strided_slice %214 {offsets = [0, 0], sizes = [8, 128], strides = [1, 1]} : vector<8x256xf32> to vector<8x128xf32>
    %216 = math.tanh %215 : vector<8x128xf32>
    %c112_i32_72 = arith.constant 112 : i32
    %217 = tpu.dynamic_rotate %198 by %c112_i32_72 dim 1 : vector<8x256xf32>, i32 -> vector<8x256xf32>
    %218 = vector.extract_strided_slice %217 {offsets = [0, 0], sizes = [8, 128], strides = [1, 1]} : vector<8x256xf32> to vector<8x128xf32>
    %219 = arith.negf %218 : vector<8x128xf32>
    %220 = math.exp %219 : vector<8x128xf32>
    %cst_73 = arith.constant 1.000000e+00 : f32
    %221 = vector.broadcast %cst_73 : f32 to vector<8x128xf32>
    %222 = arith.addf %221, %220 : vector<8x128xf32>
    %223 = arith.divf %221, %222 : vector<8x128xf32>
    %cst_74 = arith.constant 0.000000e+00 : f32
    %224 = vector.broadcast %cst_74 : f32 to vector<8x128xf32>
    %225 = arith.select %13, %223, %224 : vector<8x128xi1>, vector<8x128xf32>
    %226 = arith.mulf %213, %190 : vector<8x128xf32>
    %227 = arith.mulf %206, %216 : vector<8x128xf32>
    %228 = arith.addf %226, %227 : vector<8x128xf32>
    %229 = math.tanh %228 : vector<8x128xf32>
    %230 = arith.mulf %225, %229 : vector<8x128xf32>
    %231 = arith.addi %14, %c4_i32 : i32
    %c8_i32_75 = arith.constant 8 : i32
    %232 = arith.cmpi slt, %231, %c8_i32_75 : i32
    %233 = arith.select %232, %230, %189 : vector<8x128xf32>
    %234 = arith.select %232, %228, %190 : vector<8x128xf32>
    %235 = arith.index_cast %194 : i32 to index
    %c0_76 = arith.constant 0 : index
    %236 = vector.load %arg5[%235, %c0_76] : memref<64x128xf32, #tpu.memory_space<vmem>>, vector<8x128xf32>
    tpu.vector_store %arg5[%235, %c0_76], %233 {strides = array<i32>} : memref<64x128xf32, #tpu.memory_space<vmem>>, vector<8x128xf32>,
    %c5_i32 = arith.constant 5 : i32
    %c8_i32_77 = arith.constant 8 : i32
    %237 = arith.muli %c5_i32, %c8_i32_77 : i32
    %238 = tpu.assume_multiple %237, 8 : i32
    %239 = arith.index_cast %238 : i32 to index
    %c0_78 = arith.constant 0 : index
    %240 = vector.load %arg7[%239, %c0_78] : memref<64x256xf32, #tpu.memory_space<vmem>>, vector<8x256xf32>
    %cst_79 = arith.constant dense<0.000000e+00> : vector<8x256xf32>
    %241 = tpu.matmul %233, %10, %cst_79 {dimension_numbers = #tpu.dot_dimension_numbers<[1], [0], [0], [1], [0, 0, 1, 1], [], []>} : vector<8x128xf32>, vector<128x256xf32>, vector<8x256xf32> -> vector<8x256xf32>
    %242 = arith.addf %240, %241 : vector<8x256xf32>
    %243 = vector.extract_strided_slice %242 {offsets = [0, 0], sizes = [8, 128], strides = [1, 1]} : vector<8x256xf32> to vector<8x128xf32>
    %244 = arith.negf %243 : vector<8x128xf32>
    %245 = math.exp %244 : vector<8x128xf32>
    %cst_80 = arith.constant 1.000000e+00 : f32
    %246 = vector.broadcast %cst_80 : f32 to vector<8x128xf32>
    %247 = arith.addf %246, %245 : vector<8x128xf32>
    %248 = arith.divf %246, %247 : vector<8x128xf32>
    %cst_81 = arith.constant 0.000000e+00 : f32
    %249 = vector.broadcast %cst_81 : f32 to vector<8x128xf32>
    %250 = arith.select %13, %248, %249 : vector<8x128xi1>, vector<8x128xf32>
    %c208_i32_82 = arith.constant 208 : i32
    %251 = tpu.dynamic_rotate %242 by %c208_i32_82 dim 1 : vector<8x256xf32>, i32 -> vector<8x256xf32>
    %252 = vector.extract_strided_slice %251 {offsets = [0, 0], sizes = [8, 128], strides = [1, 1]} : vector<8x256xf32> to vector<8x128xf32>
    %253 = arith.negf %252 : vector<8x128xf32>
    %254 = math.exp %253 : vector<8x128xf32>
    %cst_83 = arith.constant 1.000000e+00 : f32
    %255 = vector.broadcast %cst_83 : f32 to vector<8x128xf32>
    %256 = arith.addf %255, %254 : vector<8x128xf32>
    %257 = arith.divf %255, %256 : vector<8x128xf32>
    %c160_i32_84 = arith.constant 160 : i32
    %258 = tpu.dynamic_rotate %242 by %c160_i32_84 dim 1 : vector<8x256xf32>, i32 -> vector<8x256xf32>
    %259 = vector.extract_strided_slice %258 {offsets = [0, 0], sizes = [8, 128], strides = [1, 1]} : vector<8x256xf32> to vector<8x128xf32>
    %260 = math.tanh %259 : vector<8x128xf32>
    %c112_i32_85 = arith.constant 112 : i32
    %261 = tpu.dynamic_rotate %242 by %c112_i32_85 dim 1 : vector<8x256xf32>, i32 -> vector<8x256xf32>
    %262 = vector.extract_strided_slice %261 {offsets = [0, 0], sizes = [8, 128], strides = [1, 1]} : vector<8x256xf32> to vector<8x128xf32>
    %263 = arith.negf %262 : vector<8x128xf32>
    %264 = math.exp %263 : vector<8x128xf32>
    %cst_86 = arith.constant 1.000000e+00 : f32
    %265 = vector.broadcast %cst_86 : f32 to vector<8x128xf32>
    %266 = arith.addf %265, %264 : vector<8x128xf32>
    %267 = arith.divf %265, %266 : vector<8x128xf32>
    %cst_87 = arith.constant 0.000000e+00 : f32
    %268 = vector.broadcast %cst_87 : f32 to vector<8x128xf32>
    %269 = arith.select %13, %267, %268 : vector<8x128xi1>, vector<8x128xf32>
    %270 = arith.mulf %257, %234 : vector<8x128xf32>
    %271 = arith.mulf %250, %260 : vector<8x128xf32>
    %272 = arith.addf %270, %271 : vector<8x128xf32>
    %273 = math.tanh %272 : vector<8x128xf32>
    %274 = arith.mulf %269, %273 : vector<8x128xf32>
    %275 = arith.addi %14, %c5_i32 : i32
    %c8_i32_88 = arith.constant 8 : i32
    %276 = arith.cmpi slt, %275, %c8_i32_88 : i32
    %277 = arith.select %276, %274, %233 : vector<8x128xf32>
    %278 = arith.select %276, %272, %234 : vector<8x128xf32>
    %279 = arith.index_cast %238 : i32 to index
    %c0_89 = arith.constant 0 : index
    %280 = vector.load %arg5[%279, %c0_89] : memref<64x128xf32, #tpu.memory_space<vmem>>, vector<8x128xf32>
    tpu.vector_store %arg5[%279, %c0_89], %277 {strides = array<i32>} : memref<64x128xf32, #tpu.memory_space<vmem>>, vector<8x128xf32>,
    %c6_i32 = arith.constant 6 : i32
    %c8_i32_90 = arith.constant 8 : i32
    %281 = arith.muli %c6_i32, %c8_i32_90 : i32
    %282 = tpu.assume_multiple %281, 8 : i32
    %283 = arith.index_cast %282 : i32 to index
    %c0_91 = arith.constant 0 : index
    %284 = vector.load %arg7[%283, %c0_91] : memref<64x256xf32, #tpu.memory_space<vmem>>, vector<8x256xf32>
    %cst_92 = arith.constant dense<0.000000e+00> : vector<8x256xf32>
    %285 = tpu.matmul %277, %10, %cst_92 {dimension_numbers = #tpu.dot_dimension_numbers<[1], [0], [0], [1], [0, 0, 1, 1], [], []>} : vector<8x128xf32>, vector<128x256xf32>, vector<8x256xf32> -> vector<8x256xf32>
    %286 = arith.addf %284, %285 : vector<8x256xf32>
    %287 = vector.extract_strided_slice %286 {offsets = [0, 0], sizes = [8, 128], strides = [1, 1]} : vector<8x256xf32> to vector<8x128xf32>
    %288 = arith.negf %287 : vector<8x128xf32>
    %289 = math.exp %288 : vector<8x128xf32>
    %cst_93 = arith.constant 1.000000e+00 : f32
    %290 = vector.broadcast %cst_93 : f32 to vector<8x128xf32>
    %291 = arith.addf %290, %289 : vector<8x128xf32>
    %292 = arith.divf %290, %291 : vector<8x128xf32>
    %cst_94 = arith.constant 0.000000e+00 : f32
    %293 = vector.broadcast %cst_94 : f32 to vector<8x128xf32>
    %294 = arith.select %13, %292, %293 : vector<8x128xi1>, vector<8x128xf32>
    %c208_i32_95 = arith.constant 208 : i32
    %295 = tpu.dynamic_rotate %286 by %c208_i32_95 dim 1 : vector<8x256xf32>, i32 -> vector<8x256xf32>
    %296 = vector.extract_strided_slice %295 {offsets = [0, 0], sizes = [8, 128], strides = [1, 1]} : vector<8x256xf32> to vector<8x128xf32>
    %297 = arith.negf %296 : vector<8x128xf32>
    %298 = math.exp %297 : vector<8x128xf32>
    %cst_96 = arith.constant 1.000000e+00 : f32
    %299 = vector.broadcast %cst_96 : f32 to vector<8x128xf32>
    %300 = arith.addf %299, %298 : vector<8x128xf32>
    %301 = arith.divf %299, %300 : vector<8x128xf32>
    %c160_i32_97 = arith.constant 160 : i32
    %302 = tpu.dynamic_rotate %286 by %c160_i32_97 dim 1 : vector<8x256xf32>, i32 -> vector<8x256xf32>
    %303 = vector.extract_strided_slice %302 {offsets = [0, 0], sizes = [8, 128], strides = [1, 1]} : vector<8x256xf32> to vector<8x128xf32>
    %304 = math.tanh %303 : vector<8x128xf32>
    %c112_i32_98 = arith.constant 112 : i32
    %305 = tpu.dynamic_rotate %286 by %c112_i32_98 dim 1 : vector<8x256xf32>, i32 -> vector<8x256xf32>
    %306 = vector.extract_strided_slice %305 {offsets = [0, 0], sizes = [8, 128], strides = [1, 1]} : vector<8x256xf32> to vector<8x128xf32>
    %307 = arith.negf %306 : vector<8x128xf32>
    %308 = math.exp %307 : vector<8x128xf32>
    %cst_99 = arith.constant 1.000000e+00 : f32
    %309 = vector.broadcast %cst_99 : f32 to vector<8x128xf32>
    %310 = arith.addf %309, %308 : vector<8x128xf32>
    %311 = arith.divf %309, %310 : vector<8x128xf32>
    %cst_100 = arith.constant 0.000000e+00 : f32
    %312 = vector.broadcast %cst_100 : f32 to vector<8x128xf32>
    %313 = arith.select %13, %311, %312 : vector<8x128xi1>, vector<8x128xf32>
    %314 = arith.mulf %301, %278 : vector<8x128xf32>
    %315 = arith.mulf %294, %304 : vector<8x128xf32>
    %316 = arith.addf %314, %315 : vector<8x128xf32>
    %317 = math.tanh %316 : vector<8x128xf32>
    %318 = arith.mulf %313, %317 : vector<8x128xf32>
    %319 = arith.addi %14, %c6_i32 : i32
    %c8_i32_101 = arith.constant 8 : i32
    %320 = arith.cmpi slt, %319, %c8_i32_101 : i32
    %321 = arith.select %320, %318, %277 : vector<8x128xf32>
    %322 = arith.select %320, %316, %278 : vector<8x128xf32>
    %323 = arith.index_cast %282 : i32 to index
    %c0_102 = arith.constant 0 : index
    %324 = vector.load %arg5[%323, %c0_102] : memref<64x128xf32, #tpu.memory_space<vmem>>, vector<8x128xf32>
    tpu.vector_store %arg5[%323, %c0_102], %321 {strides = array<i32>} : memref<64x128xf32, #tpu.memory_space<vmem>>, vector<8x128xf32>,
    %c7_i32 = arith.constant 7 : i32
    %c8_i32_103 = arith.constant 8 : i32
    %325 = arith.muli %c7_i32, %c8_i32_103 : i32
    %326 = tpu.assume_multiple %325, 8 : i32
    %327 = arith.index_cast %326 : i32 to index
    %c0_104 = arith.constant 0 : index
    %328 = vector.load %arg7[%327, %c0_104] : memref<64x256xf32, #tpu.memory_space<vmem>>, vector<8x256xf32>
    %cst_105 = arith.constant dense<0.000000e+00> : vector<8x256xf32>
    %329 = tpu.matmul %321, %10, %cst_105 {dimension_numbers = #tpu.dot_dimension_numbers<[1], [0], [0], [1], [0, 0, 1, 1], [], []>} : vector<8x128xf32>, vector<128x256xf32>, vector<8x256xf32> -> vector<8x256xf32>
    %330 = arith.addf %328, %329 : vector<8x256xf32>
    %331 = vector.extract_strided_slice %330 {offsets = [0, 0], sizes = [8, 128], strides = [1, 1]} : vector<8x256xf32> to vector<8x128xf32>
    %332 = arith.negf %331 : vector<8x128xf32>
    %333 = math.exp %332 : vector<8x128xf32>
    %cst_106 = arith.constant 1.000000e+00 : f32
    %334 = vector.broadcast %cst_106 : f32 to vector<8x128xf32>
    %335 = arith.addf %334, %333 : vector<8x128xf32>
    %336 = arith.divf %334, %335 : vector<8x128xf32>
    %cst_107 = arith.constant 0.000000e+00 : f32
    %337 = vector.broadcast %cst_107 : f32 to vector<8x128xf32>
    %338 = arith.select %13, %336, %337 : vector<8x128xi1>, vector<8x128xf32>
    %c208_i32_108 = arith.constant 208 : i32
    %339 = tpu.dynamic_rotate %330 by %c208_i32_108 dim 1 : vector<8x256xf32>, i32 -> vector<8x256xf32>
    %340 = vector.extract_strided_slice %339 {offsets = [0, 0], sizes = [8, 128], strides = [1, 1]} : vector<8x256xf32> to vector<8x128xf32>
    %341 = arith.negf %340 : vector<8x128xf32>
    %342 = math.exp %341 : vector<8x128xf32>
    %cst_109 = arith.constant 1.000000e+00 : f32
    %343 = vector.broadcast %cst_109 : f32 to vector<8x128xf32>
    %344 = arith.addf %343, %342 : vector<8x128xf32>
    %345 = arith.divf %343, %344 : vector<8x128xf32>
    %c160_i32_110 = arith.constant 160 : i32
    %346 = tpu.dynamic_rotate %330 by %c160_i32_110 dim 1 : vector<8x256xf32>, i32 -> vector<8x256xf32>
    %347 = vector.extract_strided_slice %346 {offsets = [0, 0], sizes = [8, 128], strides = [1, 1]} : vector<8x256xf32> to vector<8x128xf32>
    %348 = math.tanh %347 : vector<8x128xf32>
    %c112_i32_111 = arith.constant 112 : i32
    %349 = tpu.dynamic_rotate %330 by %c112_i32_111 dim 1 : vector<8x256xf32>, i32 -> vector<8x256xf32>
    %350 = vector.extract_strided_slice %349 {offsets = [0, 0], sizes = [8, 128], strides = [1, 1]} : vector<8x256xf32> to vector<8x128xf32>
    %351 = arith.negf %350 : vector<8x128xf32>
    %352 = math.exp %351 : vector<8x128xf32>
    %cst_112 = arith.constant 1.000000e+00 : f32
    %353 = vector.broadcast %cst_112 : f32 to vector<8x128xf32>
    %354 = arith.addf %353, %352 : vector<8x128xf32>
    %355 = arith.divf %353, %354 : vector<8x128xf32>
    %cst_113 = arith.constant 0.000000e+00 : f32
    %356 = vector.broadcast %cst_113 : f32 to vector<8x128xf32>
    %357 = arith.select %13, %355, %356 : vector<8x128xi1>, vector<8x128xf32>
    %358 = arith.mulf %345, %322 : vector<8x128xf32>
    %359 = arith.mulf %338, %348 : vector<8x128xf32>
    %360 = arith.addf %358, %359 : vector<8x128xf32>
    %361 = math.tanh %360 : vector<8x128xf32>
    %362 = arith.mulf %357, %361 : vector<8x128xf32>
    %363 = arith.addi %14, %c7_i32 : i32
    %c8_i32_114 = arith.constant 8 : i32
    %364 = arith.cmpi slt, %363, %c8_i32_114 : i32
    %365 = arith.select %364, %362, %321 : vector<8x128xf32>
    %366 = arith.select %364, %360, %322 : vector<8x128xf32>
    %367 = arith.index_cast %326 : i32 to index
    %c0_115 = arith.constant 0 : index
    %368 = vector.load %arg5[%367, %c0_115] : memref<64x128xf32, #tpu.memory_space<vmem>>, vector<8x128xf32>
    tpu.vector_store %arg5[%367, %c0_115], %365 {strides = array<i32>} : memref<64x128xf32, #tpu.memory_space<vmem>>, vector<8x128xf32>,
    %c8_i32_116 = arith.constant 8 : i32
    %c0_117 = arith.constant 0 : index
    %c0_118 = arith.constant 0 : index
    %369 = vector.load %arg8[%c0_117, %c0_118] : memref<8x128xf32, #tpu.memory_space<vmem>>, vector<8x128xf32>
    tpu.vector_store %arg8[%c0_117, %c0_118], %365 {strides = array<i32>} : memref<8x128xf32, #tpu.memory_space<vmem>>, vector<8x128xf32>,
    %c0_119 = arith.constant 0 : index
    %c0_120 = arith.constant 0 : index
    %370 = vector.load %arg9[%c0_119, %c0_120] : memref<8x128xf32, #tpu.memory_space<vmem>>, vector<8x128xf32>
    tpu.vector_store %arg9[%c0_119, %c0_120], %366 {strides = array<i32>} : memref<8x128xf32, #tpu.memory_space<vmem>>, vector<8x128xf32>,
    %c0_i32_121 = arith.constant 0 : i32
    %371 = arith.cmpi eq, %arg0, %c0_i32_121 : i32
    %372 = arith.extui %371 : i1 to i32
    %c0_i32_122 = arith.constant 0 : i32
    %373 = arith.cmpi ne, %372, %c0_i32_122 : i32
    scf.if %373 {
      %c0_123 = arith.constant 0 : index
      %c0_124 = arith.constant 0 : index
      %374 = vector.load %arg6[%c0_123, %c0_124] : memref<8x128xf32, #tpu.memory_space<vmem>>, vector<8x128xf32>
      tpu.vector_store %arg6[%c0_123, %c0_124], %366 {strides = array<i32>} : memref<8x128xf32, #tpu.memory_space<vmem>>, vector<8x128xf32>,
    } else {
    }
    return
  }
  func.func @transform_0(%arg0: i32) -> (i32, i32) {
    %c0_i32 = arith.constant 0 : i32
    %c0_i32_0 = arith.constant 0 : i32
    return %arg0, %c0_i32 : i32, i32
  }
  func.func @transform_1(%arg0: i32) -> (i32, i32) {
    %c0_i32 = arith.constant 0 : i32
    %c0_i32_0 = arith.constant 0 : i32
    %c0_i32_1 = arith.constant 0 : i32
    return %c0_i32, %c0_i32_0 : i32, i32
  }
  func.func @transform_2(%arg0: i32) -> (i32, i32) {
    %c0_i32 = arith.constant 0 : i32
    %c0_i32_0 = arith.constant 0 : i32
    %c0_i32_1 = arith.constant 0 : i32
    return %c0_i32, %c0_i32_0 : i32, i32
  }
  func.func @transform_3(%arg0: i32) -> (i32, i32) {
    %c0_i32 = arith.constant 0 : i32
    %c0_i32_0 = arith.constant 0 : i32
    %c0_i32_1 = arith.constant 0 : i32
    return %c0_i32, %c0_i32_0 : i32, i32
  }
  func.func @transform_4(%arg0: i32) -> (i32, i32) {
    %c0_i32 = arith.constant 0 : i32
    %c0_i32_0 = arith.constant 0 : i32
    return %arg0, %c0_i32 : i32, i32
  }
  func.func @transform_5(%arg0: i32) -> (i32, i32) {
    %c0_i32 = arith.constant 0 : i32
    %c0_i32_0 = arith.constant 0 : i32
    %c0_i32_1 = arith.constant 0 : i32
    return %c0_i32, %c0_i32_0 : i32, i32
  }
}

</mosaic_0001>

<llo_original>
// kernel: tpu_custom_call.1
$region0: #{tpu_custom_call.1}
  #allocation0 [shape = 'u32[]', space=smem, size = 0x4, offset = 0x4, fixed_abs, tag = 'smem constant byte address 0x4 - core index']
  #allocation1 [shape = 'u32[144,128]{1,0:T(1,128)}', space=vmem, size = 0x12000, scoped, tag = 'internal scratch']
  #allocation2 [shape = 'f32[64,256]{1,0:T(8,128)}', space=vmem, size = 0x10000, scoped, tag = 'scratch operand']
  #allocation3 [shape = 'f32[8,128]{1,0:T(8,128)}', space=vmem, size = 0x1000, scoped, tag = 'scratch operand']
  #allocation4 [shape = 'f32[8,128]{1,0:T(8,128)}', space=vmem, size = 0x1000, scoped, tag = 'scratch operand']
  %s0 = inlined_call_operand.hbm [shape: f32[64,128], index: 0, kind: input, shape index: {}]
  %s1 = inlined_call_operand.hbm [shape: f32[128,256], index: 1, kind: input, shape index: {}]
  %s2 = inlined_call_operand.hbm [shape: f32[128,256], index: 2, kind: input, shape index: {}]
  %s3 = inlined_call_operand.vmem [shape: f32[1,256], index: 3, kind: input, shape index: {}]
  %s4 = inlined_call_operand.hbm [shape: f32[64,128], index: 4, kind: output, shape index: {0}]
  %s5 = inlined_call_operand.hbm [shape: f32[8,128], index: 5, kind: output, shape index: {1}]
  %6 = xla_tuple %s4, %s5
  %s7 = sld [smem:[#allocation0]]
  $region54: #{tpu_custom_call.1} parent=0
    _
  %s9 = ssub.s32 1, %s7
  %s10 = scalar_select 0, %s9, %s7
  $region1: #{tpu_custom_call.1} parent=0
    #allocation5 [shape = 'u8[32768]{0}', space=vmem, size = 0x8000, scoped, tag = 'input window, operand 0, single buffered']
    #allocation6 [shape = 's32[1]{0}', space=sflag, size = 0x4, scoped, tag = 'scoped memory for tpu_custom_call.1']
    #allocation7 [shape = 's32[1]{0}', space=sflag, size = 0x4, scoped, tag = 'scoped memory for tpu_custom_call.1']
    #allocation8 [shape = 'u8[131072]{0}', space=vmem, size = 0x20000, scoped, tag = 'input window, operand 1, single buffered']
    #allocation9 [shape = 's32[1]{0}', space=sflag, size = 0x4, scoped, tag = 'scoped memory for tpu_custom_call.1']
    #allocation10 [shape = 'u8[131072]{0}', space=vmem, size = 0x20000, scoped, tag = 'input window, operand 2, single buffered']
    #allocation11 [shape = 'u8[32768]{0}', space=vmem, size = 0x8000, scoped, tag = 'output window, operand 0, single buffered']
    #allocation12 [shape = 'u8[4096]{0}', space=vmem, size = 0x1000, scoped, tag = 'output window, operand 1, single buffered']
    #allocation13 [shape = 's32[1]{0}', space=sflag, size = 0x4, scoped, tag = 'scoped memory for tpu_custom_call.1']
    %11 = vsyncpa [#allocation6], 0
    %12 = vsyncpa [#allocation9], 0
    %13 = vsyncpa [#allocation7], 0
    %14 = vsyncpa [#allocation13], 0
    // Predicated region
    $region2: #{tpu_custom_call.1} parent=1 // pred_check
      _
    $region3: #{tpu_custom_call.1} parent=1 // pred_check_branch
      %16 = sbr.rel (0) target = $region5
    $region4: #{tpu_custom_call.1} parent=1 // pred_region
      %s18 = ssub.s32 1024, 1024
      %19 = vsyncadd [#allocation6], %s18
      %s20 = sshll.u32 [#allocation5], 4
      %s21 = int_to_ptr.vmem [resolvable:$true] %s20
      %26 = dma.hbm_to_vmem [thread:$0]  %s0, 1024, %s21, [#allocation6], 128, 128, 8
    $region5: #{tpu_custom_call.1} parent=1 // pred_fallthru
      _
    // Predicated region
    $region6: #{tpu_custom_call.1} parent=1 // pred_check
      _
    $region7: #{tpu_custom_call.1} parent=1 // pred_check_branch
      %28 = sbr.rel (0) target = $region9
    $region8: #{tpu_custom_call.1} parent=1 // pred_region
      %s30 = ssub.s32 4096, 4096
      %31 = vsyncadd [#allocation9], %s30
      %s32 = sshll.u32 [#allocation8], 4
      %s33 = int_to_ptr.vmem [resolvable:$true] %s32
      %38 = dma.hbm_to_vmem [thread:$0]  %s1, 4096, %s33, [#allocation9], 256, 256, 16
    $region9: #{tpu_custom_call.1} parent=1 // pred_fallthru
      _
    // Predicated region
    $region10: #{tpu_custom_call.1} parent=1 // pred_check
      _
    $region11: #{tpu_custom_call.1} parent=1 // pred_check_branch
      %40 = sbr.rel (0) target = $region13
    $region12: #{tpu_custom_call.1} parent=1 // pred_region
      %s42 = ssub.s32 4096, 4096
      %43 = vsyncadd [#allocation9], %s42
      %s44 = sshll.u32 [#allocation10], 4
      %s45 = int_to_ptr.vmem [resolvable:$true] %s44
      %50 = dma.hbm_to_vmem [thread:$0]  %s2, 4096, %s45, [#allocation9], 256, 256, 16
    $region13: #{tpu_custom_call.1} parent=1 // pred_fallthru
      _
    // Predicated region
    $region14: #{tpu_custom_call.1} parent=1 // pred_check
      _
    $region15: #{tpu_custom_call.1} parent=1 // pred_check_branch
      %52 = sbr.rel (0) target = $region17
    $region16: #{tpu_custom_call.1} parent=1 // pred_region
      _
    $region17: #{tpu_custom_call.1} parent=1 // pred_fallthru
      _
    // Predicated region
    $region18: #{tpu_custom_call.1} parent=1 // pred_check
      _
    $region19: #{tpu_custom_call.1} parent=1 // pred_check_branch
      %54 = sbr.rel (0) target = $region21
    $region20: #{tpu_custom_call.1} parent=1 // pred_region
      %55 = dma.done [#allocation6], 1024
    $region21: #{tpu_custom_call.1} parent=1 // pred_fallthru
      _
    // Predicated region
    $region22: #{tpu_custom_call.1} parent=1 // pred_check
      _
    $region23: #{tpu_custom_call.1} parent=1 // pred_check_branch
      %57 = sbr.rel (0) target = $region25
    $region24: #{tpu_custom_call.1} parent=1 // pred_region
      %58 = dma.done [#allocation9], 4096
    $region25: #{tpu_custom_call.1} parent=1 // pred_fallthru
      _
    // Predicated region
    $region26: #{tpu_custom_call.1} parent=1 // pred_check
      _
    $region27: #{tpu_custom_call.1} parent=1 // pred_check_branch
      %60 = sbr.rel (0) target = $region29
    $region28: #{tpu_custom_call.1} parent=1 // pred_region
      %61 = dma.done [#allocation9], 4096
    $region29: #{tpu_custom_call.1} parent=1 // pred_fallthru
      _
    %p62 = scmp.eq.s32.totalorder 0, 0
    // Predicated region
    $region30: #{tpu_custom_call.1} parent=1 // pred_check
      %p63 = pneg %p62
    $region31: #{tpu_custom_call.1} parent=1 // pred_check_branch
      %65 = sbr.rel (%p63) target = $region33
    $region32: #{tpu_custom_call.1} parent=1 // pred_region
      %66 = vst [vmem:[#allocation3] sm:$0xff] 0.0
      %67 = vst [vmem:[#allocation4] sm:$0xff] 0.0
    $region33: #{tpu_custom_call.1} parent=1 // pred_fallthru
      _
    %v68 = vld [vmem:[#allocation5] sm:$0xff]
    %v69 = vld [vmem:[#allocation5 + $0x8] sm:$0xff]
    %v70 = vld [vmem:[#allocation5 + $0x10] sm:$0xff]
    %v71 = vld [vmem:[#allocation5 + $0x18] sm:$0xff]
    %v72 = vld [vmem:[#allocation5 + $0x20] sm:$0xff]
    %v73 = vld [vmem:[#allocation5 + $0x28] sm:$0xff]
    %v74 = vld [vmem:[#allocation5 + $0x30] sm:$0xff]
    %v75 = vld [vmem:[#allocation5 + $0x38] sm:$0xff]
    %v76 = vld [vmem:[#allocation8] sm:$0xff]
    %v77 = vld [vmem:[#allocation8 + $0x8] sm:$0xff]
    %v78 = vld [vmem:[#allocation8 + $0x10] sm:$0xff]
    %v79 = vld [vmem:[#allocation8 + $0x18] sm:$0xff]
    %v80 = vld [vmem:[#allocation8 + $0x20] sm:$0xff]
    %v81 = vld [vmem:[#allocation8 + $0x28] sm:$0xff]
    %v82 = vld [vmem:[#allocation8 + $0x30] sm:$0xff]
    %v83 = vld [vmem:[#allocation8 + $0x38] sm:$0xff]
    %v84 = vld [vmem:[#allocation8 + $0x40] sm:$0xff]
    %v85 = vld [vmem:[#allocation8 + $0x48] sm:$0xff]
    %v86 = vld [vmem:[#allocation8 + $0x50] sm:$0xff]
    %v87 = vld [vmem:[#allocation8 + $0x58] sm:$0xff]
    %v88 = vld [vmem:[#allocation8 + $0x60] sm:$0xff]
    %v89 = vld [vmem:[#allocation8 + $0x68] sm:$0xff]
    %v90 = vld [vmem:[#allocation8 + $0x70] sm:$0xff]
    %v91 = vld [vmem:[#allocation8 + $0x78] sm:$0xff]
    %v92 = vld [vmem:[#allocation8 + $0x80] sm:$0xff]
    %v93 = vld [vmem:[#allocation8 + $0x88] sm:$0xff]
    %v94 = vld [vmem:[#allocation8 + $0x90] sm:$0xff]
    %v95 = vld [vmem:[#allocation8 + $0x98] sm:$0xff]
    %v96 = vld [vmem:[#allocation8 + $0xa0] sm:$0xff]
    %v97 = vld [vmem:[#allocation8 + $0xa8] sm:$0xff]
    %v98 = vld [vmem:[#allocation8 + $0xb0] sm:$0xff]
    %v99 = vld [vmem:[#allocation8 + $0xb8] sm:$0xff]
    %v100 = vld [vmem:[#allocation8 + $0xc0] sm:$0xff]
    %v101 = vld [vmem:[#allocation8 + $0xc8] sm:$0xff]
    %v102 = vld [vmem:[#allocation8 + $0xd0] sm:$0xff]
    %v103 = vld [vmem:[#allocation8 + $0xd8] sm:$0xff]
    %v104 = vld [vmem:[#allocation8 + $0xe0] sm:$0xff]
    %v105 = vld [vmem:[#allocation8 + $0xe8] sm:$0xff]
    %v106 = vld [vmem:[#allocation8 + $0xf0] sm:$0xff]
    %v107 = vld [vmem:[#allocation8 + $0xf8] sm:$0xff]
    %v108 = vld [vmem:[%s3] sm:$0x3]
    %v110 = vlaneseq
    %v111 = vshrl.u32 %v110, 7
    %v112 = vsub.s32 0, %v111
    %v113 = vrot.slane %v108, %v112
    %v114 = vlaneseq
    %v115 = vshrl.u32 %v114, 7
    %v116 = vsub.s32 1, %v115
    %v117 = vrot.slane %v108, %v116
    %120 = vmatprep.subr.mxu0 %v77
    %121 = vmatpush1.msra.mxu0 %v76
    %122 = vmatprep.subr.mxu0 %v79
    %123 = vmatpush1.msra.mxu0 %v78
    %124 = vmatprep.subr.mxu0 %v81
    %125 = vmatpush1.msra.mxu0 %v80
    %126 = vmatprep.subr.mxu0 %v83
    %127 = vmatpush1.msra.mxu0 %v82
    %128 = vmatprep.subr.mxu0 %v85
    %129 = vmatpush1.msra.mxu0 %v84
    %130 = vmatprep.subr.mxu0 %v87
    %131 = vmatpush1.msra.mxu0 %v86
    %132 = vmatprep.subr.mxu0 %v89
    %133 = vmatpush1.msra.mxu0 %v88
    %134 = vmatprep.subr.mxu0 %v91
    %135 = vmatpush1.msra.mxu0 %v90
    %136 = vmatprep.subr.mxu0 %v93
    %137 = vmatpush1.msra.mxu0 %v92
    %138 = vmatprep.subr.mxu0 %v95
    %139 = vmatpush1.msra.mxu0 %v94
    %140 = vmatprep.subr.mxu0 %v97
    %141 = vmatpush1.msra.mxu0 %v96
    %142 = vmatprep.subr.mxu0 %v99
    %143 = vmatpush1.msra.mxu0 %v98
    %144 = vmatprep.subr.mxu0 %v101
    %145 = vmatpush1.msra.mxu0 %v100
    %146 = vmatprep.subr.mxu0 %v103
    %147 = vmatpush1.msra.mxu0 %v102
    %148 = vmatprep.subr.mxu0 %v105
    %149 = vmatpush1.msra.mxu0 %v104
    %150 = vmatprep.subr.mxu0 %v107
    %151 = vmatpush1.msra.mxu0 %v106
    %152 = vmatprep.subr.mxu0 0.0
    %153 = vmatpush1.msra.mxu0 0.0
    %154 = vmatprep.subr.mxu0 0.0
    %155 = vmatpush1.msra.mxu0 0.0
    %156 = vmatprep.subr.mxu0 0.0
    %157 = vmatpush1.msra.mxu0 0.0
    %158 = vmatprep.subr.mxu0 0.0
    %159 = vmatpush1.msra.mxu0 0.0
    %160 = vmatprep.subr.mxu0 0.0
    %161 = vmatpush1.msra.mxu0 0.0
    %162 = vmatprep.subr.mxu0 0.0
    %163 = vmatpush1.msra.mxu0 0.0
    %164 = vmatprep.subr.mxu0 0.0
    %165 = vmatpush1.msra.mxu0 0.0
    %166 = vmatprep.subr.mxu0 0.0
    %167 = vmatpush1.msra.mxu0 0.0
    %168 = vmatprep.subr.mxu0 0.0
    %169 = vmatpush1.msra.mxu0 0.0
    %170 = vmatprep.subr.mxu0 0.0
    %171 = vmatpush1.msra.mxu0 0.0
    %172 = vmatprep.subr.mxu0 0.0
    %173 = vmatpush1.msra.mxu0 0.0
    %174 = vmatprep.subr.mxu0 0.0
    %175 = vmatpush1.msra.mxu0 0.0
    %176 = vmatprep.subr.mxu0 0.0
    %177 = vmatpush1.msra.mxu0 0.0
    %178 = vmatprep.subr.mxu0 0.0
    %179 = vmatpush1.msra.mxu0 0.0
    %180 = vmatprep.subr.mxu0 0.0
    %181 = vmatpush1.msra.mxu0 0.0
    %182 = vmatprep.subr.mxu0 0.0
    %183 = vmatpush1.msra.mxu0 0.0
    %184 = vmatprep.mubr.f32.mxu0 0.0
    %185 = vmatmul.mubr.f32.gmra.mrb[0].mxu0 %v68
    %v186 = vpop.f32.mrb[0].mxu0
    %v187 = vadd.f32 %v113, %v186
    %v188 = vpop.f32.mrb[0].mxu0
    %v189 = vadd.f32 %v117, %v188
    %190 = vmatprep.mubr.f32.mxu0 0.0
    %191 = vmatmul.mubr.f32.gmra.mrb[0].mxu0 %v69
    %v192 = vpop.f32.mrb[0].mxu0
    %v193 = vadd.f32 %v113, %v192
    %v194 = vpop.f32.mrb[0].mxu0
    %v195 = vadd.f32 %v117, %v194
    %196 = vmatprep.mubr.f32.mxu0 0.0
    %197 = vmatmul.mubr.f32.gmra.mrb[0].mxu0 %v70
    %v198 = vpop.f32.mrb[0].mxu0
    %v199 = vadd.f32 %v113, %v198
    %v200 = vpop.f32.mrb[0].mxu0
    %v201 = vadd.f32 %v117, %v200
    %202 = vmatprep.mubr.f32.mxu0 0.0
    %203 = vmatmul.mubr.f32.gmra.mrb[0].mxu0 %v71
    %v204 = vpop.f32.mrb[0].mxu0
    %v205 = vadd.f32 %v113, %v204
    %v206 = vpop.f32.mrb[0].mxu0
    %v207 = vadd.f32 %v117, %v206
    %208 = vmatprep.mubr.f32.mxu0 0.0
    %209 = vmatmul.mubr.f32.gmra.mrb[0].mxu0 %v72
    %v210 = vpop.f32.mrb[0].mxu0
    %v211 = vadd.f32 %v113, %v210
    %v212 = vpop.f32.mrb[0].mxu0
    %v213 = vadd.f32 %v117, %v212
    %214 = vmatprep.mubr.f32.mxu0 0.0
    %215 = vmatmul.mubr.f32.gmra.mrb[0].mxu0 %v73
    %v216 = vpop.f32.mrb[0].mxu0
    %v217 = vadd.f32 %v113, %v216
    %v218 = vpop.f32.mrb[0].mxu0
    %v219 = vadd.f32 %v117, %v218
    %220 = vmatprep.mubr.f32.mxu0 0.0
    %221 = vmatmul.mubr.f32.gmra.mrb[0].mxu0 %v74
    %v222 = vpop.f32.mrb[0].mxu0
    %v223 = vadd.f32 %v113, %v222
    %v224 = vpop.f32.mrb[0].mxu0
    %v225 = vadd.f32 %v117, %v224
    %226 = vmatprep.mubr.f32.mxu0 0.0
    %227 = vmatmul.mubr.f32.gmra.mrb[0].mxu0 %v75
    %v228 = vpop.f32.mrb[0].mxu0
    %v229 = vadd.f32 %v113, %v228
    %v230 = vpop.f32.mrb[0].mxu0
    %v231 = vadd.f32 %v117, %v230
    %232 = vdwg.mxu0
    %233 = vst [vmem:[#allocation2] sm:$0xff] %v187
    %234 = vst [vmem:[#allocation2 + $0x8] sm:$0xff] %v189
    %235 = vst [vmem:[#allocation2 + $0x10] sm:$0xff] %v193
    %236 = vst [vmem:[#allocation2 + $0x18] sm:$0xff] %v195
    %237 = vst [vmem:[#allocation2 + $0x20] sm:$0xff] %v199
    %238 = vst [vmem:[#allocation2 + $0x28] sm:$0xff] %v201
    %239 = vst [vmem:[#allocation2 + $0x30] sm:$0xff] %v205
    %240 = vst [vmem:[#allocation2 + $0x38] sm:$0xff] %v207
    %241 = vst [vmem:[#allocation2 + $0x40] sm:$0xff] %v211
    %242 = vst [vmem:[#allocation2 + $0x48] sm:$0xff] %v213
    %243 = vst [vmem:[#allocation2 + $0x50] sm:$0xff] %v217
    %244 = vst [vmem:[#allocation2 + $0x58] sm:$0xff] %v219
    %245 = vst [vmem:[#allocation2 + $0x60] sm:$0xff] %v223
    %246 = vst [vmem:[#allocation2 + $0x68] sm:$0xff] %v225
    %247 = vst [vmem:[#allocation2 + $0x70] sm:$0xff] %v229
    %248 = vst [vmem:[#allocation2 + $0x78] sm:$0xff] %v231
    %v249 = vld [vmem:[#allocation10] sm:$0xff]
    %v250 = vld [vmem:[#allocation10 + $0x8] sm:$0xff]
    %v251 = vld [vmem:[#allocation10 + $0x10] sm:$0xff]
    %v252 = vld [vmem:[#allocation10 + $0x18] sm:$0xff]
    %v253 = vld [vmem:[#allocation10 + $0x20] sm:$0xff]
    %v254 = vld [vmem:[#allocation10 + $0x28] sm:$0xff]
    %v255 = vld [vmem:[#allocation10 + $0x30] sm:$0xff]
    %v256 = vld [vmem:[#allocation10 + $0x38] sm:$0xff]
    %v257 = vld [vmem:[#allocation10 + $0x40] sm:$0xff]
    %v258 = vld [vmem:[#allocation10 + $0x48] sm:$0xff]
    %v259 = vld [vmem:[#allocation10 + $0x50] sm:$0xff]
    %v260 = vld [vmem:[#allocation10 + $0x58] sm:$0xff]
    %v261 = vld [vmem:[#allocation10 + $0x60] sm:$0xff]
    %v262 = vld [vmem:[#allocation10 + $0x68] sm:$0xff]
    %v263 = vld [vmem:[#allocation10 + $0x70] sm:$0xff]
    %v264 = vld [vmem:[#allocation10 + $0x78] sm:$0xff]
    %v265 = vld [vmem:[#allocation10 + $0x80] sm:$0xff]
    %v266 = vld [vmem:[#allocation10 + $0x88] sm:$0xff]
    %v267 = vld [vmem:[#allocation10 + $0x90] sm:$0xff]
    %v268 = vld [vmem:[#allocation10 + $0x98] sm:$0xff]
    %v269 = vld [vmem:[#allocation10 + $0xa0] sm:$0xff]
    %v270 = vld [vmem:[#allocation10 + $0xa8] sm:$0xff]
    %v271 = vld [vmem:[#allocation10 + $0xb0] sm:$0xff]
    %v272 = vld [vmem:[#allocation10 + $0xb8] sm:$0xff]
    %v273 = vld [vmem:[#allocation10 + $0xc0] sm:$0xff]
    %v274 = vld [vmem:[#allocation10 + $0xc8] sm:$0xff]
    %v275 = vld [vmem:[#allocation10 + $0xd0] sm:$0xff]
    %v276 = vld [vmem:[#allocation10 + $0xd8] sm:$0xff]
    %v277 = vld [vmem:[#allocation10 + $0xe0] sm:$0xff]
    %v278 = vld [vmem:[#allocation10 + $0xe8] sm:$0xff]
    %v279 = vld [vmem:[#allocation10 + $0xf0] sm:$0xff]
    %v280 = vld [vmem:[#allocation10 + $0xf8] sm:$0xff]
    %v281 = vlaneseq
    %v282 = vand.u32 %v281, 127
    %vm283 = vcmp.lt.s32.totalorder %v282, 48
    %s284 = smul.u32 0, 8
    %v285 = vld [vmem:[#allocation3] sm:$0xff]
    %v286 = vld [vmem:[#allocation4] sm:$0xff]
    %s287 = smul.u32 0, 2
    %s288 = smul.addr %s287, 8
    %s289 = scalar_lea.vmem [#allocation2], %s288
    %v290 = vld [vmem:[%s289] sm:$0xff]
    %v291 = vld [vmem:[%s289 + $0x8] sm:$0xff]
    %292 = vmatprep.subr.mxu0 %v250
    %293 = vmatpush1.msra.mxu0 %v249
    %294 = vmatprep.subr.mxu0 %v252
    %295 = vmatpush1.msra.mxu0 %v251
    %296 = vmatprep.subr.mxu0 %v254
    %297 = vmatpush1.msra.mxu0 %v253
    %298 = vmatprep.subr.mxu0 %v256
    %299 = vmatpush1.msra.mxu0 %v255
    %300 = vmatprep.subr.mxu0 %v258
    %301 = vmatpush1.msra.mxu0 %v257
    %302 = vmatprep.subr.mxu0 %v260
    %303 = vmatpush1.msra.mxu0 %v259
    %304 = vmatprep.subr.mxu0 %v262
    %305 = vmatpush1.msra.mxu0 %v261
    %306 = vmatprep.subr.mxu0 %v264
    %307 = vmatpush1.msra.mxu0 %v263
    %308 = vmatprep.subr.mxu0 %v266
    %309 = vmatpush1.msra.mxu0 %v265
    %310 = vmatprep.subr.mxu0 %v268
    %311 = vmatpush1.msra.mxu0 %v267
    %312 = vmatprep.subr.mxu0 %v270
    %313 = vmatpush1.msra.mxu0 %v269
    %314 = vmatprep.subr.mxu0 %v272
    %315 = vmatpush1.msra.mxu0 %v271
    %316 = vmatprep.subr.mxu0 %v274
    %317 = vmatpush1.msra.mxu0 %v273
    %318 = vmatprep.subr.mxu0 %v276
    %319 = vmatpush1.msra.mxu0 %v275
    %320 = vmatprep.subr.mxu0 %v278
    %321 = vmatpush1.msra.mxu0 %v277
    %322 = vmatprep.subr.mxu0 %v280
    %323 = vmatpush1.msra.mxu0 %v279
    %324 = vmatprep.subr.mxu0 0.0
    %325 = vmatpush1.msra.mxu0 0.0
    %326 = vmatprep.subr.mxu0 0.0
    %327 = vmatpush1.msra.mxu0 0.0
    %328 = vmatprep.subr.mxu0 0.0
    %329 = vmatpush1.msra.mxu0 0.0
    %330 = vmatprep.subr.mxu0 0.0
    %331 = vmatpush1.msra.mxu0 0.0
    %332 = vmatprep.subr.mxu0 0.0
    %333 = vmatpush1.msra.mxu0 0.0
    %334 = vmatprep.subr.mxu0 0.0
    %335 = vmatpush1.msra.mxu0 0.0
    %336 = vmatprep.subr.mxu0 0.0
    %337 = vmatpush1.msra.mxu0 0.0
    %338 = vmatprep.subr.mxu0 0.0
    %339 = vmatpush1.msra.mxu0 0.0
    %340 = vmatprep.subr.mxu0 0.0
    %341 = vmatpush1.msra.mxu0 0.0
    %342 = vmatprep.subr.mxu0 0.0
    %343 = vmatpush1.msra.mxu0 0.0
    %344 = vmatprep.subr.mxu0 0.0
    %345 = vmatpush1.msra.mxu0 0.0
    %346 = vmatprep.subr.mxu0 0.0
    %347 = vmatpush1.msra.mxu0 0.0
    %348 = vmatprep.subr.mxu0 0.0
    %349 = vmatpush1.msra.mxu0 0.0
    %350 = vmatprep.subr.mxu0 0.0
    %351 = vmatpush1.msra.mxu0 0.0
    %352 = vmatprep.subr.mxu0 0.0
    %353 = vmatpush1.msra.mxu0 0.0
    %354 = vmatprep.subr.mxu0 0.0
    %355 = vmatpush1.msra.mxu0 0.0
    %356 = vmatprep.mubr.f32.mxu0 0.0
    %357 = vmatmul.mubr.f32.gmra.mrb[0].mxu0 %v285
    %v358 = vpop.f32.mrb[0].mxu0
    %v359 = vadd.f32 0.0, %v358
    %v360 = vpop.f32.mrb[0].mxu0
    %v361 = vadd.f32 0.0, %v360
    %362 = vdwg.mxu0
    %v363 = vadd.f32 %v290, %v359
    %v364 = vadd.f32 %v291, %v361
    %v365 = vxor.u32 %v363, 2147483648
    %v366 = vmul.f32 %v365, 1.442695
    %v367 = vpow.pop %v366
    %v368 = vadd.f32 %v367, 1.0
    %v369 = vrcp.pop %v368
    %v370 = vmul.f32 1.0, %v369
    %v371 = vsel %vm283, %v370, 0.0
    %372 = vrot.lane.b32.xlu0 %v363, 80
    %v373 = vpop.permute.xlu0 %372
    %374 = vrot.lane.b32.xlu0 %v364, 80
    %v375 = vpop.permute.xlu0 %374
    %vm376 = vcmp.lt.s32.totalorder %v282, 80
    %v377 = vsel %vm376, %v373, %v375
    %v378 = vxor.u32 %v377, 2147483648
    %v379 = vmul.f32 %v378, 1.442695
    %v380 = vpow.pop %v379
    %v381 = vadd.f32 %v380, 1.0
    %v382 = vrcp.pop %v381
    %v383 = vmul.f32 1.0, %v382
    %384 = vrot.lane.b32.xlu0 %v363, 32
    %v385 = vpop.permute.xlu0 %384
    %386 = vrot.lane.b32.xlu0 %v364, 32
    %v387 = vpop.permute.xlu0 %386
    %vm388 = vcmp.lt.s32.totalorder %v282, 32
    %v389 = vsel %vm388, %v385, %v387
    %v390 = vtanh.pop %v389
    %391 = vrot.lane.b32.xlu0 %v363, 112
    %v392 = vpop.permute.xlu0 %391
    %393 = vrot.lane.b32.xlu0 %v364, 112
    %v394 = vpop.permute.xlu0 %393
    %vm395 = vcmp.lt.s32.totalorder %v282, 112
    %v396 = vsel %vm395, %v394, %v392
    %v397 = vxor.u32 %v396, 2147483648
    %v398 = vmul.f32 %v397, 1.442695
    %v399 = vpow.pop %v398
    %v400 = vadd.f32 %v399, 1.0
    %v401 = vrcp.pop %v400
    %v402 = vmul.f32 1.0, %v401
    %v403 = vsel %vm283, %v402, 0.0
    %v404 = vmul.f32 %v383, %v286
    %v405 = vmul.f32 %v371, %v390
    %v406 = vadd.f32 %v404, %v405
    %v407 = vtanh.pop %v406
    %v408 = vmul.f32 %v403, %v407
    %p409 = scmp.lt.s32.totalorder %s284, 8
    %s410 = scalar_select %p409, 1, 0
    %v411 = vstv %s410
    %vm412 = vcmp.eq.s32.totalorder %v411, 1
    %v413 = vsel %vm412, %v408, %v285
    %v414 = vsel %vm412, %v406, %v286
    %415 = vst [vmem:[#allocation11] sm:$0xff] %v413
    %s416 = smul.u32 1, 2
    %s417 = smul.addr %s416, 8
    %s418 = scalar_lea.vmem [#allocation2], %s417
    %v419 = vld [vmem:[%s418] sm:$0xff]
    %v420 = vld [vmem:[%s418 + $0x8] sm:$0xff]
    %421 = vmatprep.subr.mxu0 %v250
    %422 = vmatpush1.msra.mxu0 %v249
    %423 = vmatprep.subr.mxu0 %v252
    %424 = vmatpush1.msra.mxu0 %v251
    %425 = vmatprep.subr.mxu0 %v254
    %426 = vmatpush1.msra.mxu0 %v253
    %427 = vmatprep.subr.mxu0 %v256
    %428 = vmatpush1.msra.mxu0 %v255
    %429 = vmatprep.subr.mxu0 %v258
    %430 = vmatpush1.msra.mxu0 %v257
    %431 = vmatprep.subr.mxu0 %v260
    %432 = vmatpush1.msra.mxu0 %v259
    %433 = vmatprep.subr.mxu0 %v262
    %434 = vmatpush1.msra.mxu0 %v261
    %435 = vmatprep.subr.mxu0 %v264
    %436 = vmatpush1.msra.mxu0 %v263
    %437 = vmatprep.subr.mxu0 %v266
    %438 = vmatpush1.msra.mxu0 %v265
    %439 = vmatprep.subr.mxu0 %v268
    %440 = vmatpush1.msra.mxu0 %v267
    %441 = vmatprep.subr.mxu0 %v270
    %442 = vmatpush1.msra.mxu0 %v269
    %443 = vmatprep.subr.mxu0 %v272
    %444 = vmatpush1.msra.mxu0 %v271
    %445 = vmatprep.subr.mxu0 %v274
    %446 = vmatpush1.msra.mxu0 %v273
    %447 = vmatprep.subr.mxu0 %v276
    %448 = vmatpush1.msra.mxu0 %v275
    %449 = vmatprep.subr.mxu0 %v278
    %450 = vmatpush1.msra.mxu0 %v277
    %451 = vmatprep.subr.mxu0 %v280
    %452 = vmatpush1.msra.mxu0 %v279
    %453 = vmatprep.subr.mxu0 0.0
    %454 = vmatpush1.msra.mxu0 0.0
    %455 = vmatprep.subr.mxu0 0.0
    %456 = vmatpush1.msra.mxu0 0.0
    %457 = vmatprep.subr.mxu0 0.0
    %458 = vmatpush1.msra.mxu0 0.0
    %459 = vmatprep.subr.mxu0 0.0
    %460 = vmatpush1.msra.mxu0 0.0
    %461 = vmatprep.subr.mxu0 0.0
    %462 = vmatpush1.msra.mxu0 0.0
    %463 = vmatprep.subr.mxu0 0.0
    %464 = vmatpush1.msra.mxu0 0.0
    %465 = vmatprep.subr.mxu0 0.0
    %466 = vmatpush1.msra.mxu0 0.0
    %467 = vmatprep.subr.mxu0 0.0
    %468 = vmatpush1.msra.mxu0 0.0
    %469 = vmatprep.subr.mxu0 0.0
    %470 = vmatpush1.msra.mxu0 0.0
    %471 = vmatprep.subr.mxu0 0.0
    %472 = vmatpush1.msra.mxu0 0.0
    %473 = vmatprep.subr.mxu0 0.0
    %474 = vmatpush1.msra.mxu0 0.0
    %475 = vmatprep.subr.mxu0 0.0
    %476 = vmatpush1.msra.mxu0 0.0
    %477 = vmatprep.subr.mxu0 0.0
    %478 = vmatpush1.msra.mxu0 0.0
    %479 = vmatprep.subr.mxu0 0.0
    %480 = vmatpush1.msra.mxu0 0.0
    %481 = vmatprep.subr.mxu0 0.0
    %482 = vmatpush1.msra.mxu0 0.0
    %483 = vmatprep.subr.mxu0 0.0
    %484 = vmatpush1.msra.mxu0 0.0
    %485 = vmatprep.mubr.f32.mxu0 0.0
    %486 = vmatmul.mubr.f32.gmra.mrb[0].mxu0 %v413
    %v487 = vpop.f32.mrb[0].mxu0
    %v488 = vadd.f32 0.0, %v487
    %v489 = vpop.f32.mrb[0].mxu0
    %v490 = vadd.f32 0.0, %v489
    %491 = vdwg.mxu0
    %v492 = vadd.f32 %v419, %v488
    %v493 = vadd.f32 %v420, %v490
    %v494 = vxor.u32 %v492, 2147483648
    %v495 = vmul.f32 %v494, 1.442695
    %v496 = vpow.pop %v495
    %v497 = vadd.f32 %v496, 1.0
    %v498 = vrcp.pop %v497
    %v499 = vmul.f32 1.0, %v498
    %v500 = vsel %vm283, %v499, 0.0
    %501 = vrot.lane.b32.xlu0 %v492, 80
    %v502 = vpop.permute.xlu0 %501
    %503 = vrot.lane.b32.xlu0 %v493, 80
    %v504 = vpop.permute.xlu0 %503
    %v505 = vsel %vm376, %v502, %v504
    %v506 = vxor.u32 %v505, 2147483648
    %v507 = vmul.f32 %v506, 1.442695
    %v508 = vpow.pop %v507
    %v509 = vadd.f32 %v508, 1.0
    %v510 = vrcp.pop %v509
    %v511 = vmul.f32 1.0, %v510
    %512 = vrot.lane.b32.xlu0 %v492, 32
    %v513 = vpop.permute.xlu0 %512
    %514 = vrot.lane.b32.xlu0 %v493, 32
    %v515 = vpop.permute.xlu0 %514
    %v516 = vsel %vm388, %v513, %v515
    %v517 = vtanh.pop %v516
    %518 = vrot.lane.b32.xlu0 %v492, 112
    %v519 = vpop.permute.xlu0 %518
    %520 = vrot.lane.b32.xlu0 %v493, 112
    %v521 = vpop.permute.xlu0 %520
    %v522 = vsel %vm395, %v521, %v519
    %v523 = vxor.u32 %v522, 2147483648
    %v524 = vmul.f32 %v523, 1.442695
    %v525 = vpow.pop %v524
    %v526 = vadd.f32 %v525, 1.0
    %v527 = vrcp.pop %v526
    %v528 = vmul.f32 1.0, %v527
    %v529 = vsel %vm283, %v528, 0.0
    %v530 = vmul.f32 %v511, %v414
    %v531 = vmul.f32 %v500, %v517
    %v532 = vadd.f32 %v530, %v531
    %v533 = vtanh.pop %v532
    %v534 = vmul.f32 %v529, %v533
    %s535 = sadd.s32 %s284, 1
    %p536 = scmp.lt.s32.totalorder %s535, 8
    %s537 = scalar_select %p536, 1, 0
    %v538 = vstv %s537
    %vm539 = vcmp.eq.s32.totalorder %v538, 1
    %v540 = vsel %vm539, %v534, %v413
    %v541 = vsel %vm539, %v532, %v414
    %s542 = scalar_lea.vmem [#allocation11], 8
    %543 = vst [vmem:[%s542] sm:$0xff] %v540
    %s544 = smul.u32 2, 2
    %s545 = smul.addr %s544, 8
    %s546 = scalar_lea.vmem [#allocation2], %s545
    %v547 = vld [vmem:[%s546] sm:$0xff]
    %v548 = vld [vmem:[%s546 + $0x8] sm:$0xff]
    %549 = vmatprep.subr.mxu0 %v250
    %550 = vmatpush1.msra.mxu0 %v249
    %551 = vmatprep.subr.mxu0 %v252
    %552 = vmatpush1.msra.mxu0 %v251
    %553 = vmatprep.subr.mxu0 %v254
    %554 = vmatpush1.msra.mxu0 %v253
    %555 = vmatprep.subr.mxu0 %v256
    %556 = vmatpush1.msra.mxu0 %v255
    %557 = vmatprep.subr.mxu0 %v258
    %558 = vmatpush1.msra.mxu0 %v257
    %559 = vmatprep.subr.mxu0 %v260
    %560 = vmatpush1.msra.mxu0 %v259
    %561 = vmatprep.subr.mxu0 %v262
    %562 = vmatpush1.msra.mxu0 %v261
    %563 = vmatprep.subr.mxu0 %v264
    %564 = vmatpush1.msra.mxu0 %v263
    %565 = vmatprep.subr.mxu0 %v266
    %566 = vmatpush1.msra.mxu0 %v265
    %567 = vmatprep.subr.mxu0 %v268
    %568 = vmatpush1.msra.mxu0 %v267
    %569 = vmatprep.subr.mxu0 %v270
    %570 = vmatpush1.msra.mxu0 %v269
    %571 = vmatprep.subr.mxu0 %v272
    %572 = vmatpush1.msra.mxu0 %v271
    %573 = vmatprep.subr.mxu0 %v274
    %574 = vmatpush1.msra.mxu0 %v273
    %575 = vmatprep.subr.mxu0 %v276
    %576 = vmatpush1.msra.mxu0 %v275
    %577 = vmatprep.subr.mxu0 %v278
    %578 = vmatpush1.msra.mxu0 %v277
    %579 = vmatprep.subr.mxu0 %v280
    %580 = vmatpush1.msra.mxu0 %v279
    %581 = vmatprep.subr.mxu0 0.0
    %582 = vmatpush1.msra.mxu0 0.0
    %583 = vmatprep.subr.mxu0 0.0
    %584 = vmatpush1.msra.mxu0 0.0
    %585 = vmatprep.subr.mxu0 0.0
    %586 = vmatpush1.msra.mxu0 0.0
    %587 = vmatprep.subr.mxu0 0.0
    %588 = vmatpush1.msra.mxu0 0.0
    %589 = vmatprep.subr.mxu0 0.0
    %590 = vmatpush1.msra.mxu0 0.0
    %591 = vmatprep.subr.mxu0 0.0
    %592 = vmatpush1.msra.mxu0 0.0
    %593 = vmatprep.subr.mxu0 0.0
    %594 = vmatpush1.msra.mxu0 0.0
    %595 = vmatprep.subr.mxu0 0.0
    %596 = vmatpush1.msra.mxu0 0.0
    %597 = vmatprep.subr.mxu0 0.0
    %598 = vmatpush1.msra.mxu0 0.0
    %599 = vmatprep.subr.mxu0 0.0
    %600 = vmatpush1.msra.mxu0 0.0
    %601 = vmatprep.subr.mxu0 0.0
    %602 = vmatpush1.msra.mxu0 0.0
    %603 = vmatprep.subr.mxu0 0.0
    %604 = vmatpush1.msra.mxu0 0.0
    %605 = vmatprep.subr.mxu0 0.0
    %606 = vmatpush1.msra.mxu0 0.0
    %607 = vmatprep.subr.mxu0 0.0
    %608 = vmatpush1.msra.mxu0 0.0
    %609 = vmatprep.subr.mxu0 0.0
    %610 = vmatpush1.msra.mxu0 0.0
    %611 = vmatprep.subr.mxu0 0.0
    %612 = vmatpush1.msra.mxu0 0.0
    %613 = vmatprep.mubr.f32.mxu0 0.0
    %614 = vmatmul.mubr.f32.gmra.mrb[0].mxu0 %v540
    %v615 = vpop.f32.mrb[0].mxu0
    %v616 = vadd.f32 0.0, %v615
    %v617 = vpop.f32.mrb[0].mxu0
    %v618 = vadd.f32 0.0, %v617
    %619 = vdwg.mxu0
    %v620 = vadd.f32 %v547, %v616
    %v621 = vadd.f32 %v548, %v618
    %v622 = vxor.u32 %v620, 2147483648
    %v623 = vmul.f32 %v622, 1.442695
    %v624 = vpow.pop %v623
    %v625 = vadd.f32 %v624, 1.0
    %v626 = vrcp.pop %v625
    %v627 = vmul.f32 1.0, %v626
    %v628 = vsel %vm283, %v627, 0.0
    %629 = vrot.lane.b32.xlu0 %v620, 80
    %v630 = vpop.permute.xlu0 %629
    %631 = vrot.lane.b32.xlu0 %v621, 80
    %v632 = vpop.permute.xlu0 %631
    %v633 = vsel %vm376, %v630, %v632
    %v634 = vxor.u32 %v633, 2147483648
    %v635 = vmul.f32 %v634, 1.442695
    %v636 = vpow.pop %v635
    %v637 = vadd.f32 %v636, 1.0
    %v638 = vrcp.pop %v637
    %v639 = vmul.f32 1.0, %v638
    %640 = vrot.lane.b32.xlu0 %v620, 32
    %v641 = vpop.permute.xlu0 %640
    %642 = vrot.lane.b32.xlu0 %v621, 32
    %v643 = vpop.permute.xlu0 %642
    %v644 = vsel %vm388, %v641, %v643
    %v645 = vtanh.pop %v644
    %646 = vrot.lane.b32.xlu0 %v620, 112
    %v647 = vpop.permute.xlu0 %646
    %648 = vrot.lane.b32.xlu0 %v621, 112
    %v649 = vpop.permute.xlu0 %648
    %v650 = vsel %vm395, %v649, %v647
    %v651 = vxor.u32 %v650, 2147483648
    %v652 = vmul.f32 %v651, 1.442695
    %v653 = vpow.pop %v652
    %v654 = vadd.f32 %v653, 1.0
    %v655 = vrcp.pop %v654
    %v656 = vmul.f32 1.0, %v655
    %v657 = vsel %vm283, %v656, 0.0
    %v658 = vmul.f32 %v639, %v541
    %v659 = vmul.f32 %v628, %v645
    %v660 = vadd.f32 %v658, %v659
    %v661 = vtanh.pop %v660
    %v662 = vmul.f32 %v657, %v661
    %s663 = sadd.s32 %s284, 2
    %p664 = scmp.lt.s32.totalorder %s663, 8
    %s665 = scalar_select %p664, 1, 0
    %v666 = vstv %s665
    %vm667 = vcmp.eq.s32.totalorder %v666, 1
    %v668 = vsel %vm667, %v662, %v540
    %v669 = vsel %vm667, %v660, %v541
    %s670 = scalar_lea.vmem [#allocation11], 16
    %671 = vst [vmem:[%s670] sm:$0xff] %v668
    %s672 = smul.u32 3, 2
    %s673 = smul.addr %s672, 8
    %s674 = scalar_lea.vmem [#allocation2], %s673
    %v675 = vld [vmem:[%s674] sm:$0xff]
    %v676 = vld [vmem:[%s674 + $0x8] sm:$0xff]
    %677 = vmatprep.subr.mxu0 %v250
    %678 = vmatpush1.msra.mxu0 %v249
    %679 = vmatprep.subr.mxu0 %v252
    %680 = vmatpush1.msra.mxu0 %v251
    %681 = vmatprep.subr.mxu0 %v254
    %682 = vmatpush1.msra.mxu0 %v253
    %683 = vmatprep.subr.mxu0 %v256
    %684 = vmatpush1.msra.mxu0 %v255
    %685 = vmatprep.subr.mxu0 %v258
    %686 = vmatpush1.msra.mxu0 %v257
    %687 = vmatprep.subr.mxu0 %v260
    %688 = vmatpush1.msra.mxu0 %v259
    %689 = vmatprep.subr.mxu0 %v262
    %690 = vmatpush1.msra.mxu0 %v261
    %691 = vmatprep.subr.mxu0 %v264
    %692 = vmatpush1.msra.mxu0 %v263
    %693 = vmatprep.subr.mxu0 %v266
    %694 = vmatpush1.msra.mxu0 %v265
    %695 = vmatprep.subr.mxu0 %v268
    %696 = vmatpush1.msra.mxu0 %v267
    %697 = vmatprep.subr.mxu0 %v270
    %698 = vmatpush1.msra.mxu0 %v269
    %699 = vmatprep.subr.mxu0 %v272
    %700 = vmatpush1.msra.mxu0 %v271
    %701 = vmatprep.subr.mxu0 %v274
    %702 = vmatpush1.msra.mxu0 %v273
    %703 = vmatprep.subr.mxu0 %v276
    %704 = vmatpush1.msra.mxu0 %v275
    %705 = vmatprep.subr.mxu0 %v278
    %706 = vmatpush1.msra.mxu0 %v277
    %707 = vmatprep.subr.mxu0 %v280
    %708 = vmatpush1.msra.mxu0 %v279
    %709 = vmatprep.subr.mxu0 0.0
    %710 = vmatpush1.msra.mxu0 0.0
    %711 = vmatprep.subr.mxu0 0.0
    %712 = vmatpush1.msra.mxu0 0.0
    %713 = vmatprep.subr.mxu0 0.0
    %714 = vmatpush1.msra.mxu0 0.0
    %715 = vmatprep.subr.mxu0 0.0
    %716 = vmatpush1.msra.mxu0 0.0
    %717 = vmatprep.subr.mxu0 0.0
    %718 = vmatpush1.msra.mxu0 0.0
    %719 = vmatprep.subr.mxu0 0.0
    %720 = vmatpush1.msra.mxu0 0.0
    %721 = vmatprep.subr.mxu0 0.0
    %722 = vmatpush1.msra.mxu0 0.0
    %723 = vmatprep.subr.mxu0 0.0
    %724 = vmatpush1.msra.mxu0 0.0
    %725 = vmatprep.subr.mxu0 0.0
    %726 = vmatpush1.msra.mxu0 0.0
    %727 = vmatprep.subr.mxu0 0.0
    %728 = vmatpush1.msra.mxu0 0.0
    %729 = vmatprep.subr.mxu0 0.0
    %730 = vmatpush1.msra.mxu0 0.0
    %731 = vmatprep.subr.mxu0 0.0
    %732 = vmatpush1.msra.mxu0 0.0
    %733 = vmatprep.subr.mxu0 0.0
    %734 = vmatpush1.msra.mxu0 0.0
    %735 = vmatprep.subr.mxu0 0.0
    %736 = vmatpush1.msra.mxu0 0.0
    %737 = vmatprep.subr.mxu0 0.0
    %738 = vmatpush1.msra.mxu0 0.0
    %739 = vmatprep.subr.mxu0 0.0
    %740 = vmatpush1.msra.mxu0 0.0
    %741 = vmatprep.mubr.f32.mxu0 0.0
    %742 = vmatmul.mubr.f32.gmra.mrb[0].mxu0 %v668
    %v743 = vpop.f32.mrb[0].mxu0
    %v744 = vadd.f32 0.0, %v743
    %v745 = vpop.f32.mrb[0].mxu0
    %v746 = vadd.f32 0.0, %v745
    %747 = vdwg.mxu0
    %v748 = vadd.f32 %v675, %v744
    %v749 = vadd.f32 %v676, %v746
    %v750 = vxor.u32 %v748, 2147483648
    %v751 = vmul.f32 %v750, 1.442695
    %v752 = vpow.pop %v751
    %v753 = vadd.f32 %v752, 1.0
    %v754 = vrcp.pop %v753
    %v755 = vmul.f32 1.0, %v754
    %v756 = vsel %vm283, %v755, 0.0
    %757 = vrot.lane.b32.xlu0 %v748, 80
    %v758 = vpop.permute.xlu0 %757
    %759 = vrot.lane.b32.xlu0 %v749, 80
    %v760 = vpop.permute.xlu0 %759
    %v761 = vsel %vm376, %v758, %v760
    %v762 = vxor.u32 %v761, 2147483648
    %v763 = vmul.f32 %v762, 1.442695
    %v764 = vpow.pop %v763
    %v765 = vadd.f32 %v764, 1.0
    %v766 = vrcp.pop %v765
    %v767 = vmul.f32 1.0, %v766
    %768 = vrot.lane.b32.xlu0 %v748, 32
    %v769 = vpop.permute.xlu0 %768
    %770 = vrot.lane.b32.xlu0 %v749, 32
    %v771 = vpop.permute.xlu0 %770
    %v772 = vsel %vm388, %v769, %v771
    %v773 = vtanh.pop %v772
    %774 = vrot.lane.b32.xlu0 %v748, 112
    %v775 = vpop.permute.xlu0 %774
    %776 = vrot.lane.b32.xlu0 %v749, 112
    %v777 = vpop.permute.xlu0 %776
    %v778 = vsel %vm395, %v777, %v775
    %v779 = vxor.u32 %v778, 2147483648
    %v780 = vmul.f32 %v779, 1.442695
    %v781 = vpow.pop %v780
    %v782 = vadd.f32 %v781, 1.0
    %v783 = vrcp.pop %v782
    %v784 = vmul.f32 1.0, %v783
    %v785 = vsel %vm283, %v784, 0.0
    %v786 = vmul.f32 %v767, %v669
    %v787 = vmul.f32 %v756, %v773
    %v788 = vadd.f32 %v786, %v787
    %v789 = vtanh.pop %v788
    %v790 = vmul.f32 %v785, %v789
    %s791 = sadd.s32 %s284, 3
    %p792 = scmp.lt.s32.totalorder %s791, 8
    %s793 = scalar_select %p792, 1, 0
    %v794 = vstv %s793
    %vm795 = vcmp.eq.s32.totalorder %v794, 1
    %v796 = vsel %vm795, %v790, %v668
    %v797 = vsel %vm795, %v788, %v669
    %s798 = scalar_lea.vmem [#allocation11], 24
    %799 = vst [vmem:[%s798] sm:$0xff] %v796
    %s800 = smul.u32 4, 2
    %s801 = smul.addr %s800, 8
    %s802 = scalar_lea.vmem [#allocation2], %s801
    %v803 = vld [vmem:[%s802] sm:$0xff]
    %v804 = vld [vmem:[%s802 + $0x8] sm:$0xff]
    %805 = vmatprep.subr.mxu0 %v250
    %806 = vmatpush1.msra.mxu0 %v249
    %807 = vmatprep.subr.mxu0 %v252
    %808 = vmatpush1.msra.mxu0 %v251
    %809 = vmatprep.subr.mxu0 %v254
    %810 = vmatpush1.msra.mxu0 %v253
    %811 = vmatprep.subr.mxu0 %v256
    %812 = vmatpush1.msra.mxu0 %v255
    %813 = vmatprep.subr.mxu0 %v258
    %814 = vmatpush1.msra.mxu0 %v257
    %815 = vmatprep.subr.mxu0 %v260
    %816 = vmatpush1.msra.mxu0 %v259
    %817 = vmatprep.subr.mxu0 %v262
    %818 = vmatpush1.msra.mxu0 %v261
    %819 = vmatprep.subr.mxu0 %v264
    %820 = vmatpush1.msra.mxu0 %v263
    %821 = vmatprep.subr.mxu0 %v266
    %822 = vmatpush1.msra.mxu0 %v265
    %823 = vmatprep.subr.mxu0 %v268
    %824 = vmatpush1.msra.mxu0 %v267
    %825 = vmatprep.subr.mxu0 %v270
    %826 = vmatpush1.msra.mxu0 %v269
    %827 = vmatprep.subr.mxu0 %v272
    %828 = vmatpush1.msra.mxu0 %v271
    %829 = vmatprep.subr.mxu0 %v274
    %830 = vmatpush1.msra.mxu0 %v273
    %831 = vmatprep.subr.mxu0 %v276
    %832 = vmatpush1.msra.mxu0 %v275
    %833 = vmatprep.subr.mxu0 %v278
    %834 = vmatpush1.msra.mxu0 %v277
    %835 = vmatprep.subr.mxu0 %v280
    %836 = vmatpush1.msra.mxu0 %v279
    %837 = vmatprep.subr.mxu0 0.0
    %838 = vmatpush1.msra.mxu0 0.0
    %839 = vmatprep.subr.mxu0 0.0
    %840 = vmatpush1.msra.mxu0 0.0
    %841 = vmatprep.subr.mxu0 0.0
    %842 = vmatpush1.msra.mxu0 0.0
    %843 = vmatprep.subr.mxu0 0.0
    %844 = vmatpush1.msra.mxu0 0.0
    %845 = vmatprep.subr.mxu0 0.0
    %846 = vmatpush1.msra.mxu0 0.0
    %847 = vmatprep.subr.mxu0 0.0
    %848 = vmatpush1.msra.mxu0 0.0
    %849 = vmatprep.subr.mxu0 0.0
    %850 = vmatpush1.msra.mxu0 0.0
    %851 = vmatprep.subr.mxu0 0.0
    %852 = vmatpush1.msra.mxu0 0.0
    %853 = vmatprep.subr.mxu0 0.0
    %854 = vmatpush1.msra.mxu0 0.0
    %855 = vmatprep.subr.mxu0 0.0
    %856 = vmatpush1.msra.mxu0 0.0
    %857 = vmatprep.subr.mxu0 0.0
    %858 = vmatpush1.msra.mxu0 0.0
    %859 = vmatprep.subr.mxu0 0.0
    %860 = vmatpush1.msra.mxu0 0.0
    %861 = vmatprep.subr.mxu0 0.0
    %862 = vmatpush1.msra.mxu0 0.0
    %863 = vmatprep.subr.mxu0 0.0
    %864 = vmatpush1.msra.mxu0 0.0
    %865 = vmatprep.subr.mxu0 0.0
    %866 = vmatpush1.msra.mxu0 0.0
    %867 = vmatprep.subr.mxu0 0.0
    %868 = vmatpush1.msra.mxu0 0.0
    %869 = vmatprep.mubr.f32.mxu0 0.0
    %870 = vmatmul.mubr.f32.gmra.mrb[0].mxu0 %v796
    %v871 = vpop.f32.mrb[0].mxu0
    %v872 = vadd.f32 0.0, %v871
    %v873 = vpop.f32.mrb[0].mxu0
    %v874 = vadd.f32 0.0, %v873
    %875 = vdwg.mxu0
    %v876 = vadd.f32 %v803, %v872
    %v877 = vadd.f32 %v804, %v874
    %v878 = vxor.u32 %v876, 2147483648
    %v879 = vmul.f32 %v878, 1.442695
    %v880 = vpow.pop %v879
    %v881 = vadd.f32 %v880, 1.0
    %v882 = vrcp.pop %v881
    %v883 = vmul.f32 1.0, %v882
    %v884 = vsel %vm283, %v883, 0.0
    %885 = vrot.lane.b32.xlu0 %v876, 80
    %v886 = vpop.permute.xlu0 %885
    %887 = vrot.lane.b32.xlu0 %v877, 80
    %v888 = vpop.permute.xlu0 %887
    %v889 = vsel %vm376, %v886, %v888
    %v890 = vxor.u32 %v889, 2147483648
    %v891 = vmul.f32 %v890, 1.442695
    %v892 = vpow.pop %v891
    %v893 = vadd.f32 %v892, 1.0
    %v894 = vrcp.pop %v893
    %v895 = vmul.f32 1.0, %v894
    %896 = vrot.lane.b32.xlu0 %v876, 32
    %v897 = vpop.permute.xlu0 %896
    %898 = vrot.lane.b32.xlu0 %v877, 32
    %v899 = vpop.permute.xlu0 %898
    %v900 = vsel %vm388, %v897, %v899
    %v901 = vtanh.pop %v900
    %902 = vrot.lane.b32.xlu0 %v876, 112
    %v903 = vpop.permute.xlu0 %902
    %904 = vrot.lane.b32.xlu0 %v877, 112
    %v905 = vpop.permute.xlu0 %904
    %v906 = vsel %vm395, %v905, %v903
    %v907 = vxor.u32 %v906, 2147483648
    %v908 = vmul.f32 %v907, 1.442695
    %v909 = vpow.pop %v908
    %v910 = vadd.f32 %v909, 1.0
    %v911 = vrcp.pop %v910
    %v912 = vmul.f32 1.0, %v911
    %v913 = vsel %vm283, %v912, 0.0
    %v914 = vmul.f32 %v895, %v797
    %v915 = vmul.f32 %v884, %v901
    %v916 = vadd.f32 %v914, %v915
    %v917 = vtanh.pop %v916
    %v918 = vmul.f32 %v913, %v917
    %s919 = sadd.s32 %s284, 4
    %p920 = scmp.lt.s32.totalorder %s919, 8
    %s921 = scalar_select %p920, 1, 0
    %v922 = vstv %s921
    %vm923 = vcmp.eq.s32.totalorder %v922, 1
    %v924 = vsel %vm923, %v918, %v796
    %v925 = vsel %vm923, %v916, %v797
    %s926 = scalar_lea.vmem [#allocation11], 32
    %927 = vst [vmem:[%s926] sm:$0xff] %v924
    %s928 = smul.u32 5, 2
    %s929 = smul.addr %s928, 8
    %s930 = scalar_lea.vmem [#allocation2], %s929
    %v931 = vld [vmem:[%s930] sm:$0xff]
    %v932 = vld [vmem:[%s930 + $0x8] sm:$0xff]
    %933 = vmatprep.subr.mxu0 %v250
    %934 = vmatpush1.msra.mxu0 %v249
    %935 = vmatprep.subr.mxu0 %v252
    %936 = vmatpush1.msra.mxu0 %v251
    %937 = vmatprep.subr.mxu0 %v254
    %938 = vmatpush1.msra.mxu0 %v253
    %939 = vmatprep.subr.mxu0 %v256
    %940 = vmatpush1.msra.mxu0 %v255
    %941 = vmatprep.subr.mxu0 %v258
    %942 = vmatpush1.msra.mxu0 %v257
    %943 = vmatprep.subr.mxu0 %v260
    %944 = vmatpush1.msra.mxu0 %v259
    %945 = vmatprep.subr.mxu0 %v262
    %946 = vmatpush1.msra.mxu0 %v261
    %947 = vmatprep.subr.mxu0 %v264
    %948 = vmatpush1.msra.mxu0 %v263
    %949 = vmatprep.subr.mxu0 %v266
    %950 = vmatpush1.msra.mxu0 %v265
    %951 = vmatprep.subr.mxu0 %v268
    %952 = vmatpush1.msra.mxu0 %v267
    %953 = vmatprep.subr.mxu0 %v270
    %954 = vmatpush1.msra.mxu0 %v269
    %955 = vmatprep.subr.mxu0 %v272
    %956 = vmatpush1.msra.mxu0 %v271
    %957 = vmatprep.subr.mxu0 %v274
    %958 = vmatpush1.msra.mxu0 %v273
    %959 = vmatprep.subr.mxu0 %v276
    %960 = vmatpush1.msra.mxu0 %v275
    %961 = vmatprep.subr.mxu0 %v278
    %962 = vmatpush1.msra.mxu0 %v277
    %963 = vmatprep.subr.mxu0 %v280
    %964 = vmatpush1.msra.mxu0 %v279
    %965 = vmatprep.subr.mxu0 0.0
    %966 = vmatpush1.msra.mxu0 0.0
    %967 = vmatprep.subr.mxu0 0.0
    %968 = vmatpush1.msra.mxu0 0.0
    %969 = vmatprep.subr.mxu0 0.0
    %970 = vmatpush1.msra.mxu0 0.0
    %971 = vmatprep.subr.mxu0 0.0
    %972 = vmatpush1.msra.mxu0 0.0
    %973 = vmatprep.subr.mxu0 0.0
    %974 = vmatpush1.msra.mxu0 0.0
    %975 = vmatprep.subr.mxu0 0.0
    %976 = vmatpush1.msra.mxu0 0.0
    %977 = vmatprep.subr.mxu0 0.0
    %978 = vmatpush1.msra.mxu0 0.0
    %979 = vmatprep.subr.mxu0 0.0
    %980 = vmatpush1.msra.mxu0 0.0
    %981 = vmatprep.subr.mxu0 0.0
    %982 = vmatpush1.msra.mxu0 0.0
    %983 = vmatprep.subr.mxu0 0.0
    %984 = vmatpush1.msra.mxu0 0.0
    %985 = vmatprep.subr.mxu0 0.0
    %986 = vmatpush1.msra.mxu0 0.0
    %987 = vmatprep.subr.mxu0 0.0
    %988 = vmatpush1.msra.mxu0 0.0
    %989 = vmatprep.subr.mxu0 0.0
    %990 = vmatpush1.msra.mxu0 0.0
    %991 = vmatprep.subr.mxu0 0.0
    %992 = vmatpush1.msra.mxu0 0.0
    %993 = vmatprep.subr.mxu0 0.0
    %994 = vmatpush1.msra.mxu0 0.0
    %995 = vmatprep.subr.mxu0 0.0
    %996 = vmatpush1.msra.mxu0 0.0
    %997 = vmatprep.mubr.f32.mxu0 0.0
    %998 = vmatmul.mubr.f32.gmra.mrb[0].mxu0 %v924
    %v999 = vpop.f32.mrb[0].mxu0
    %v1000 = vadd.f32 0.0, %v999
    %v1001 = vpop.f32.mrb[0].mxu0
    %v1002 = vadd.f32 0.0, %v1001
    %1003 = vdwg.mxu0
    %v1004 = vadd.f32 %v931, %v1000
    %v1005 = vadd.f32 %v932, %v1002
    %v1006 = vxor.u32 %v1004, 2147483648
    %v1007 = vmul.f32 %v1006, 1.442695
    %v1008 = vpow.pop %v1007
    %v1009 = vadd.f32 %v1008, 1.0
    %v1010 = vrcp.pop %v1009
    %v1011 = vmul.f32 1.0, %v1010
    %v1012 = vsel %vm283, %v1011, 0.0
    %1013 = vrot.lane.b32.xlu0 %v1004, 80
    %v1014 = vpop.permute.xlu0 %1013
    %1015 = vrot.lane.b32.xlu0 %v1005, 80
    %v1016 = vpop.permute.xlu0 %1015
    %v1017 = vsel %vm376, %v1014, %v1016
    %v1018 = vxor.u32 %v1017, 2147483648
    %v1019 = vmul.f32 %v1018, 1.442695
    %v1020 = vpow.pop %v1019
    %v1021 = vadd.f32 %v1020, 1.0
    %v1022 = vrcp.pop %v1021
    %v1023 = vmul.f32 1.0, %v1022
    %1024 = vrot.lane.b32.xlu0 %v1004, 32
    %v1025 = vpop.permute.xlu0 %1024
    %1026 = vrot.lane.b32.xlu0 %v1005, 32
    %v1027 = vpop.permute.xlu0 %1026
    %v1028 = vsel %vm388, %v1025, %v1027
    %v1029 = vtanh.pop %v1028
    %1030 = vrot.lane.b32.xlu0 %v1004, 112
    %v1031 = vpop.permute.xlu0 %1030
    %1032 = vrot.lane.b32.xlu0 %v1005, 112
    %v1033 = vpop.permute.xlu0 %1032
    %v1034 = vsel %vm395, %v1033, %v1031
    %v1035 = vxor.u32 %v1034, 2147483648
    %v1036 = vmul.f32 %v1035, 1.442695
    %v1037 = vpow.pop %v1036
    %v1038 = vadd.f32 %v1037, 1.0
    %v1039 = vrcp.pop %v1038
    %v1040 = vmul.f32 1.0, %v1039
    %v1041 = vsel %vm283, %v1040, 0.0
    %v1042 = vmul.f32 %v1023, %v925
    %v1043 = vmul.f32 %v1012, %v1029
    %v1044 = vadd.f32 %v1042, %v1043
    %v1045 = vtanh.pop %v1044
    %v1046 = vmul.f32 %v1041, %v1045
    %s1047 = sadd.s32 %s284, 5
    %p1048 = scmp.lt.s32.totalorder %s1047, 8
    %s1049 = scalar_select %p1048, 1, 0
    %v1050 = vstv %s1049
    %vm1051 = vcmp.eq.s32.totalorder %v1050, 1
    %v1052 = vsel %vm1051, %v1046, %v924
    %v1053 = vsel %vm1051, %v1044, %v925
    %s1054 = scalar_lea.vmem [#allocation11], 40
    %1055 = vst [vmem:[%s1054] sm:$0xff] %v1052
    %s1056 = smul.u32 6, 2
    %s1057 = smul.addr %s1056, 8
    %s1058 = scalar_lea.vmem [#allocation2], %s1057
    %v1059 = vld [vmem:[%s1058] sm:$0xff]
    %v1060 = vld [vmem:[%s1058 + $0x8] sm:$0xff]
    %1061 = vmatprep.subr.mxu0 %v250
    %1062 = vmatpush1.msra.mxu0 %v249
    %1063 = vmatprep.subr.mxu0 %v252
    %1064 = vmatpush1.msra.mxu0 %v251
    %1065 = vmatprep.subr.mxu0 %v254
    %1066 = vmatpush1.msra.mxu0 %v253
    %1067 = vmatprep.subr.mxu0 %v256
    %1068 = vmatpush1.msra.mxu0 %v255
    %1069 = vmatprep.subr.mxu0 %v258
    %1070 = vmatpush1.msra.mxu0 %v257
    %1071 = vmatprep.subr.mxu0 %v260
    %1072 = vmatpush1.msra.mxu0 %v259
    %1073 = vmatprep.subr.mxu0 %v262
    %1074 = vmatpush1.msra.mxu0 %v261
    %1075 = vmatprep.subr.mxu0 %v264
    %1076 = vmatpush1.msra.mxu0 %v263
    %1077 = vmatprep.subr.mxu0 %v266
    %1078 = vmatpush1.msra.mxu0 %v265
    %1079 = vmatprep.subr.mxu0 %v268
    %1080 = vmatpush1.msra.mxu0 %v267
    %1081 = vmatprep.subr.mxu0 %v270
    %1082 = vmatpush1.msra.mxu0 %v269
    %1083 = vmatprep.subr.mxu0 %v272
    %1084 = vmatpush1.msra.mxu0 %v271
    %1085 = vmatprep.subr.mxu0 %v274
    %1086 = vmatpush1.msra.mxu0 %v273
    %1087 = vmatprep.subr.mxu0 %v276
    %1088 = vmatpush1.msra.mxu0 %v275
    %1089 = vmatprep.subr.mxu0 %v278
    %1090 = vmatpush1.msra.mxu0 %v277
    %1091 = vmatprep.subr.mxu0 %v280
    %1092 = vmatpush1.msra.mxu0 %v279
    %1093 = vmatprep.subr.mxu0 0.0
    %1094 = vmatpush1.msra.mxu0 0.0
    %1095 = vmatprep.subr.mxu0 0.0
    %1096 = vmatpush1.msra.mxu0 0.0
    %1097 = vmatprep.subr.mxu0 0.0
    %1098 = vmatpush1.msra.mxu0 0.0
    %1099 = vmatprep.subr.mxu0 0.0
    %1100 = vmatpush1.msra.mxu0 0.0
    %1101 = vmatprep.subr.mxu0 0.0
    %1102 = vmatpush1.msra.mxu0 0.0
    %1103 = vmatprep.subr.mxu0 0.0
    %1104 = vmatpush1.msra.mxu0 0.0
    %1105 = vmatprep.subr.mxu0 0.0
    %1106 = vmatpush1.msra.mxu0 0.0
    %1107 = vmatprep.subr.mxu0 0.0
    %1108 = vmatpush1.msra.mxu0 0.0
    %1109 = vmatprep.subr.mxu0 0.0
    %1110 = vmatpush1.msra.mxu0 0.0
    %1111 = vmatprep.subr.mxu0 0.0
    %1112 = vmatpush1.msra.mxu0 0.0
    %1113 = vmatprep.subr.mxu0 0.0
    %1114 = vmatpush1.msra.mxu0 0.0
    %1115 = vmatprep.subr.mxu0 0.0
    %1116 = vmatpush1.msra.mxu0 0.0
    %1117 = vmatprep.subr.mxu0 0.0
    %1118 = vmatpush1.msra.mxu0 0.0
    %1119 = vmatprep.subr.mxu0 0.0
    %1120 = vmatpush1.msra.mxu0 0.0
    %1121 = vmatprep.subr.mxu0 0.0
    %1122 = vmatpush1.msra.mxu0 0.0
    %1123 = vmatprep.subr.mxu0 0.0
    %1124 = vmatpush1.msra.mxu0 0.0
    %1125 = vmatprep.mubr.f32.mxu0 0.0
    %1126 = vmatmul.mubr.f32.gmra.mrb[0].mxu0 %v1052
    %v1127 = vpop.f32.mrb[0].mxu0
    %v1128 = vadd.f32 0.0, %v1127
    %v1129 = vpop.f32.mrb[0].mxu0
    %v1130 = vadd.f32 0.0, %v1129
    %1131 = vdwg.mxu0
    %v1132 = vadd.f32 %v1059, %v1128
    %v1133 = vadd.f32 %v1060, %v1130
    %v1134 = vxor.u32 %v1132, 2147483648
    %v1135 = vmul.f32 %v1134, 1.442695
    %v1136 = vpow.pop %v1135
    %v1137 = vadd.f32 %v1136, 1.0
    %v1138 = vrcp.pop %v1137
    %v1139 = vmul.f32 1.0, %v1138
    %v1140 = vsel %vm283, %v1139, 0.0
    %1141 = vrot.lane.b32.xlu0 %v1132, 80
    %v1142 = vpop.permute.xlu0 %1141
    %1143 = vrot.lane.b32.xlu0 %v1133, 80
    %v1144 = vpop.permute.xlu0 %1143
    %v1145 = vsel %vm376, %v1142, %v1144
    %v1146 = vxor.u32 %v1145, 2147483648
    %v1147 = vmul.f32 %v1146, 1.442695
    %v1148 = vpow.pop %v1147
    %v1149 = vadd.f32 %v1148, 1.0
    %v1150 = vrcp.pop %v1149
    %v1151 = vmul.f32 1.0, %v1150
    %1152 = vrot.lane.b32.xlu0 %v1132, 32
    %v1153 = vpop.permute.xlu0 %1152
    %1154 = vrot.lane.b32.xlu0 %v1133, 32
    %v1155 = vpop.permute.xlu0 %1154
    %v1156 = vsel %vm388, %v1153, %v1155
    %v1157 = vtanh.pop %v1156
    %1158 = vrot.lane.b32.xlu0 %v1132, 112
    %v1159 = vpop.permute.xlu0 %1158
    %1160 = vrot.lane.b32.xlu0 %v1133, 112
    %v1161 = vpop.permute.xlu0 %1160
    %v1162 = vsel %vm395, %v1161, %v1159
    %v1163 = vxor.u32 %v1162, 2147483648
    %v1164 = vmul.f32 %v1163, 1.442695
    %v1165 = vpow.pop %v1164
    %v1166 = vadd.f32 %v1165, 1.0
    %v1167 = vrcp.pop %v1166
    %v1168 = vmul.f32 1.0, %v1167
    %v1169 = vsel %vm283, %v1168, 0.0
    %v1170 = vmul.f32 %v1151, %v1053
    %v1171 = vmul.f32 %v1140, %v1157
    %v1172 = vadd.f32 %v1170, %v1171
    %v1173 = vtanh.pop %v1172
    %v1174 = vmul.f32 %v1169, %v1173
    %s1175 = sadd.s32 %s284, 6
    %p1176 = scmp.lt.s32.totalorder %s1175, 8
    %s1177 = scalar_select %p1176, 1, 0
    %v1178 = vstv %s1177
    %vm1179 = vcmp.eq.s32.totalorder %v1178, 1
    %v1180 = vsel %vm1179, %v1174, %v1052
    %v1181 = vsel %vm1179, %v1172, %v1053
    %s1182 = scalar_lea.vmem [#allocation11], 48
    %1183 = vst [vmem:[%s1182] sm:$0xff] %v1180
    %s1184 = smul.u32 7, 2
    %s1185 = smul.addr %s1184, 8
    %s1186 = scalar_lea.vmem [#allocation2], %s1185
    %v1187 = vld [vmem:[%s1186] sm:$0xff]
    %v1188 = vld [vmem:[%s1186 + $0x8] sm:$0xff]
    %1189 = vmatprep.subr.mxu0 %v250
    %1190 = vmatpush1.msra.mxu0 %v249
    %1191 = vmatprep.subr.mxu0 %v252
    %1192 = vmatpush1.msra.mxu0 %v251
    %1193 = vmatprep.subr.mxu0 %v254
    %1194 = vmatpush1.msra.mxu0 %v253
    %1195 = vmatprep.subr.mxu0 %v256
    %1196 = vmatpush1.msra.mxu0 %v255
    %1197 = vmatprep.subr.mxu0 %v258
    %1198 = vmatpush1.msra.mxu0 %v257
    %1199 = vmatprep.subr.mxu0 %v260
    %1200 = vmatpush1.msra.mxu0 %v259
    %1201 = vmatprep.subr.mxu0 %v262
    %1202 = vmatpush1.msra.mxu0 %v261
    %1203 = vmatprep.subr.mxu0 %v264
    %1204 = vmatpush1.msra.mxu0 %v263
    %1205 = vmatprep.subr.mxu0 %v266
    %1206 = vmatpush1.msra.mxu0 %v265
    %1207 = vmatprep.subr.mxu0 %v268
    %1208 = vmatpush1.msra.mxu0 %v267
    %1209 = vmatprep.subr.mxu0 %v270
    %1210 = vmatpush1.msra.mxu0 %v269
    %1211 = vmatprep.subr.mxu0 %v272
    %1212 = vmatpush1.msra.mxu0 %v271
    %1213 = vmatprep.subr.mxu0 %v274
    %1214 = vmatpush1.msra.mxu0 %v273
    %1215 = vmatprep.subr.mxu0 %v276
    %1216 = vmatpush1.msra.mxu0 %v275
    %1217 = vmatprep.subr.mxu0 %v278
    %1218 = vmatpush1.msra.mxu0 %v277
    %1219 = vmatprep.subr.mxu0 %v280
    %1220 = vmatpush1.msra.mxu0 %v279
    %1221 = vmatprep.subr.mxu0 0.0
    %1222 = vmatpush1.msra.mxu0 0.0
    %1223 = vmatprep.subr.mxu0 0.0
    %1224 = vmatpush1.msra.mxu0 0.0
    %1225 = vmatprep.subr.mxu0 0.0
    %1226 = vmatpush1.msra.mxu0 0.0
    %1227 = vmatprep.subr.mxu0 0.0
    %1228 = vmatpush1.msra.mxu0 0.0
    %1229 = vmatprep.subr.mxu0 0.0
    %1230 = vmatpush1.msra.mxu0 0.0
    %1231 = vmatprep.subr.mxu0 0.0
    %1232 = vmatpush1.msra.mxu0 0.0
    %1233 = vmatprep.subr.mxu0 0.0
    %1234 = vmatpush1.msra.mxu0 0.0
    %1235 = vmatprep.subr.mxu0 0.0
    %1236 = vmatpush1.msra.mxu0 0.0
    %1237 = vmatprep.subr.mxu0 0.0
    %1238 = vmatpush1.msra.mxu0 0.0
    %1239 = vmatprep.subr.mxu0 0.0
    %1240 = vmatpush1.msra.mxu0 0.0
    %1241 = vmatprep.subr.mxu0 0.0
    %1242 = vmatpush1.msra.mxu0 0.0
    %1243 = vmatprep.subr.mxu0 0.0
    %1244 = vmatpush1.msra.mxu0 0.0
    %1245 = vmatprep.subr.mxu0 0.0
    %1246 = vmatpush1.msra.mxu0 0.0
    %1247 = vmatprep.subr.mxu0 0.0
    %1248 = vmatpush1.msra.mxu0 0.0
    %1249 = vmatprep.subr.mxu0 0.0
    %1250 = vmatpush1.msra.mxu0 0.0
    %1251 = vmatprep.subr.mxu0 0.0
    %1252 = vmatpush1.msra.mxu0 0.0
    %1253 = vmatprep.mubr.f32.mxu0 0.0
    %1254 = vmatmul.mubr.f32.gmra.mrb[0].mxu0 %v1180
    %v1255 = vpop.f32.mrb[0].mxu0
    %v1256 = vadd.f32 0.0, %v1255
    %v1257 = vpop.f32.mrb[0].mxu0
    %v1258 = vadd.f32 0.0, %v1257
    %1259 = vdwg.mxu0
    %v1260 = vadd.f32 %v1187, %v1256
    %v1261 = vadd.f32 %v1188, %v1258
    %v1262 = vxor.u32 %v1260, 2147483648
    %v1263 = vmul.f32 %v1262, 1.442695
    %v1264 = vpow.pop %v1263
    %v1265 = vadd.f32 %v1264, 1.0
    %v1266 = vrcp.pop %v1265
    %v1267 = vmul.f32 1.0, %v1266
    %v1268 = vsel %vm283, %v1267, 0.0
    %1269 = vrot.lane.b32.xlu0 %v1260, 80
    %v1270 = vpop.permute.xlu0 %1269
    %1271 = vrot.lane.b32.xlu0 %v1261, 80
    %v1272 = vpop.permute.xlu0 %1271
    %v1273 = vsel %vm376, %v1270, %v1272
    %v1274 = vxor.u32 %v1273, 2147483648
    %v1275 = vmul.f32 %v1274, 1.442695
    %v1276 = vpow.pop %v1275
    %v1277 = vadd.f32 %v1276, 1.0
    %v1278 = vrcp.pop %v1277
    %v1279 = vmul.f32 1.0, %v1278
    %1280 = vrot.lane.b32.xlu0 %v1260, 32
    %v1281 = vpop.permute.xlu0 %1280
    %1282 = vrot.lane.b32.xlu0 %v1261, 32
    %v1283 = vpop.permute.xlu0 %1282
    %v1284 = vsel %vm388, %v1281, %v1283
    %v1285 = vtanh.pop %v1284
    %1286 = vrot.lane.b32.xlu0 %v1260, 112
    %v1287 = vpop.permute.xlu0 %1286
    %1288 = vrot.lane.b32.xlu0 %v1261, 112
    %v1289 = vpop.permute.xlu0 %1288
    %v1290 = vsel %vm395, %v1289, %v1287
    %v1291 = vxor.u32 %v1290, 2147483648
    %v1292 = vmul.f32 %v1291, 1.442695
    %v1293 = vpow.pop %v1292
    %v1294 = vadd.f32 %v1293, 1.0
    %v1295 = vrcp.pop %v1294
    %v1296 = vmul.f32 1.0, %v1295
    %v1297 = vsel %vm283, %v1296, 0.0
    %v1298 = vmul.f32 %v1279, %v1181
    %v1299 = vmul.f32 %v1268, %v1285
    %v1300 = vadd.f32 %v1298, %v1299
    %v1301 = vtanh.pop %v1300
    %v1302 = vmul.f32 %v1297, %v1301
    %s1303 = sadd.s32 %s284, 7
    %p1304 = scmp.lt.s32.totalorder %s1303, 8
    %s1305 = scalar_select %p1304, 1, 0
    %v1306 = vstv %s1305
    %vm1307 = vcmp.eq.s32.totalorder %v1306, 1
    %v1308 = vsel %vm1307, %v1302, %v1180
    %v1309 = vsel %vm1307, %v1300, %v1181
    %s1310 = scalar_lea.vmem [#allocation11], 56
    %1311 = vst [vmem:[%s1310] sm:$0xff] %v1308
    %1312 = vst [vmem:[#allocation3] sm:$0xff] %v1308
    %1313 = vst [vmem:[#allocation4] sm:$0xff] %v1309
    // Predicated region
    $region34: #{tpu_custom_call.1} parent=1 // pred_check
      %p1314 = pneg %p62
    $region35: #{tpu_custom_call.1} parent=1 // pred_check_branch
      %1316 = sbr.rel (%p1314) target = $region37
    $region36: #{tpu_custom_call.1} parent=1 // pred_region
      %1317 = vst [vmem:[#allocation12] sm:$0xff] %v1309
    $region37: #{tpu_custom_call.1} parent=1 // pred_fallthru
      _
    // Predicated region
    $region38: #{tpu_custom_call.1} parent=1 // pred_check
      _
    $region39: #{tpu_custom_call.1} parent=1 // pred_check_branch
      %1319 = sbr.rel (0) target = $region41
    $region40: #{tpu_custom_call.1} parent=1 // pred_region
      %s1321 = ssub.s32 1024, 1024
      %1322 = vsyncadd [#allocation7], %s1321
      %s1323 = sshll.u32 [#allocation11], 4
      %s1324 = int_to_ptr.vmem [resolvable:$true] %s1323
      %1329 = dma.vmem_to_hbm [thread:$0]  %s1324, 1024, %s4, [#allocation7], 128, 128, 8
    $region41: #{tpu_custom_call.1} parent=1 // pred_fallthru
      _
    // Predicated region
    $region42: #{tpu_custom_call.1} parent=1 // pred_check
      _
    $region43: #{tpu_custom_call.1} parent=1 // pred_check_branch
      %1331 = sbr.rel (0) target = $region45
    $region44: #{tpu_custom_call.1} parent=1 // pred_region
      %s1333 = ssub.s32 128, 128
      %1334 = vsyncadd [#allocation13], %s1333
      %s1336 = sshll.u32 [#allocation12], 4
      %s1337 = int_to_ptr.vmem [resolvable:$true] %s1336
      %1339 = dma.vmem_to_hbm [thread:$0]  %s1337, 128, %s5, [#allocation13]
    $region45: #{tpu_custom_call.1} parent=1 // pred_fallthru
      _
    // Predicated region
    $region46: #{tpu_custom_call.1} parent=1 // pred_check
      _
    $region47: #{tpu_custom_call.1} parent=1 // pred_check_branch
      %1341 = sbr.rel (0) target = $region49
    $region48: #{tpu_custom_call.1} parent=1 // pred_region
      %1342 = dma.done [#allocation7], 1024
    $region49: #{tpu_custom_call.1} parent=1 // pred_fallthru
      _
    // Predicated region
    $region50: #{tpu_custom_call.1} parent=1 // pred_check
      _
    $region51: #{tpu_custom_call.1} parent=1 // pred_check_branch
      %1344 = sbr.rel (0) target = $region53
    $region52: #{tpu_custom_call.1} parent=1 // pred_region
      %1345 = dma.done [#allocation13], 128
    $region53: #{tpu_custom_call.1} parent=1 // pred_fallthru
      _
    %1346 = vsyncpa [#allocation6], 1
    %1347 = vsyncpa [#allocation9], 1
    %1348 = vsyncpa [#allocation7], 1
    %1349 = vsyncpa [#allocation13], 1

</llo_original>
